<compile_context>
chip_gen: v7x
topology: tpu7x:2x2x1
jax: 0.10.0
libtpu: 0.0.40
codegen_flags: <defaults>
</compile_context>

<pallas_src>
import jax
import jax.numpy as jnp
from jax.experimental import pallas as pl
from jax.experimental.pallas import tpu as pltpu

IMAGE_SHAPE = (1, 28, 28)
IN_FEATURES = 1 * 28 * 28        # 784
H1, H2 = 512, 256
LATENT_VECTOR = 128              # module's `latent_vector` ctor arg
OUT_FEATURES = 1
TB_MAX = 512                     # max batch tile


def _round_up(n, m):
    return ((n + m - 1) // m) * m


def discriminator_kernel(x_ref,
                         w1_ref, b1_ref,
                         w2_ref, b2_ref,
                         w3_ref, b3_ref,
                         w4t_ref, b4_ref,
                         out_ref):
    # In-kernel bf16 cast of the input tile (hidden under the MXU-bound matmuls).
    x = x_ref[...].astype(jnp.bfloat16)                                   # (TB, 784)
    # Layer 1: Linear(784 -> 512)   (no activation -- matches nn.Sequential)
    h = jnp.dot(x, w1_ref[...], preferred_element_type=jnp.float32) + b1_ref[...]
    # Layer 2: Linear(512 -> 256) + ReLU
    h = jnp.dot(h.astype(jnp.bfloat16), w2_ref[...],
                preferred_element_type=jnp.float32) + b2_ref[...]
    h = jnp.maximum(h, 0.0)
    # Layer 3: Linear(256 -> latent) + ReLU
    h = jnp.dot(h.astype(jnp.bfloat16), w3_ref[...],
                preferred_element_type=jnp.float32) + b3_ref[...]
    h = jnp.maximum(h, 0.0)                                               # (TB, latent) f32
    # Layer 4: Linear(latent -> 1) + Sigmoid, computed transposed so the result
    # is lane-dense along the batch dim.  w4t is (8, latent) with only row 0
    # nonzero (rows 1..7 are MXU sublane padding, discarded below).
    logit8 = jnp.dot(w4t_ref[...], h.astype(jnp.bfloat16).T,
                     preferred_element_type=jnp.float32)                  # (8, TB)
    z = logit8[0:1, :] + b4_ref[...]                                      # (1, TB)
    out_ref[...] = 1.0 / (1.0 + jnp.exp(-z))        # exact sigmoid, stays in [0, 1]


def prepare_params(params):
    """One-time (out of the per-call path) cast/pack of the weights for the kernel.
    params: [(w, b), ...] with w: (in, out) f32, b: (1, out) f32."""
    (w1, b1), (w2, b2), (w3, b3), (w4, b4) = params
    w1b, w2b, w3b = (w.astype(jnp.bfloat16) for w in (w1, w2, w3))
    # Last layer stored transposed and sublane-padded to 8 rows (row 0 = real weights).
    w4t = jnp.zeros((8, LATENT_VECTOR), jnp.bfloat16)
    w4t = w4t.at[0, :].set(w4[:, 0].astype(jnp.bfloat16))
    b4s = jnp.asarray(b4, jnp.float32).reshape(1, 1)
    return (w1b, b1.astype(jnp.float32), w2b, b2.astype(jnp.float32),
            w3b, b3.astype(jnp.float32), w4t, b4s)


def discriminator_forward(x_nchw, prepped):
    """x_nchw: (B, 1, 28, 28) float32.  Returns (B, 1) float32 in [0, 1]."""
    B = x_nchw.shape[0]
    x_flat = x_nchw.reshape(B, IN_FEATURES)          # free reshape, stays f32

    # Adaptive batch tile: one tile (== padded batch) for small B, otherwise
    # 128-aligned tiles of at most TB_MAX chosen to minimize padding.
    n_tiles = pl.cdiv(B, TB_MAX)
    if n_tiles == 1:
        tb = _round_up(B, 16)
    else:
        tb = min(TB_MAX, _round_up(pl.cdiv(B, n_tiles), 128))
    B_pad = n_tiles * tb
    if B_pad != B:                                   # pad only when strictly needed
        x_flat = jnp.pad(x_flat, ((0, B_pad - B), (0, 0)))

    w1b, b1, w2b, b2, w3b, b3, w4t, b4s = prepped
    weights = (w1b, b1, w2b, b2, w3b, b3, w4t, b4s)

    x_spec = pl.BlockSpec((tb, IN_FEATURES), lambda i: (i, 0))
    out_spec = pl.BlockSpec((1, tb), lambda i: (0, i))
    # Constant index_map: blocks never change -> weights stay VMEM-resident.
    resident = lambda a: pl.BlockSpec(a.shape, lambda i: (0, 0))

    weight_bytes = sum(int(a.size) * a.dtype.itemsize for a in weights)
    cost = pl.CostEstimate(
        flops=2 * B_pad * (IN_FEATURES * H1 + H1 * H2
                           + H2 * LATENT_VECTOR + LATENT_VECTOR * 8),
        transcendentals=B_pad,
        bytes_accessed=int(x_flat.size) * x_flat.dtype.itemsize
                       + weight_bytes + B_pad * 4,
    )

    out = pl.pallas_call(
        discriminator_kernel,
        out_shape=jax.ShapeDtypeStruct((1, B_pad), jnp.float32),
        grid=(n_tiles,),
        in_specs=[x_spec] + [resident(a) for a in weights],
        out_specs=out_spec,
        compiler_params=pltpu.CompilerParams(
            dimension_semantics=("parallel",)),
        cost_estimate=cost,
    )(x_flat, *weights)

    return out[0, :B].reshape(B, OUT_FEATURES)


def reference_forward(x_nchw, params):
    """Pure-JAX f32 reference of the PyTorch module."""
    (w1, b1), (w2, b2), (w3, b3), (w4, b4) = params
    x = x_nchw.reshape(x_nchw.shape[0], -1)
    h = x @ w1 + b1
    h = jnp.maximum(h @ w2 + b2, 0.0)
    h = jnp.maximum(h @ w3 + b3, 0.0)
    return jax.nn.sigmoid(h @ w4 + b4)


def init_params(key):
    """Deterministic init mimicking torch.nn.Linear (uniform +-1/sqrt(fan_in)).
    Weights stored as (in_features, out_features); biases as (1, out_features)."""
    dims = [(IN_FEATURES, H1), (H1, H2), (H2, LATENT_VECTOR),
            (LATENT_VECTOR, OUT_FEATURES)]
    params = []
    for (fan_in, fan_out) in dims:
        key, kw, kb = jax.random.split(key, 3)
        bound = 1.0 / (fan_in ** 0.5)
        w = jax.random.uniform(kw, (fan_in, fan_out), jnp.float32, -bound, bound)
        b = jax.random.uniform(kb, (1, fan_out), jnp.float32, -bound, bound)
        params.append((w, b))
    return params


if __name__ == "__main__":
    key = jax.random.PRNGKey(0)
    k_params, k_x = jax.random.split(key)

    params = init_params(k_params)
    prepped = prepare_params(params)      # one-time weight cast/pack

    B = 2
    x = jax.random.normal(k_x, (B, *IMAGE_SHAPE), dtype=jnp.float32)  # NCHW

    out = discriminator_forward(x, prepped)
    out = jax.block_until_ready(out)

    assert out.shape == (B, OUT_FEATURES), out.shape
    assert bool(jnp.all((out >= 0.0) & (out <= 1.0)))   # exact sigmoid -> in [0, 1]

    ref = reference_forward(x, params)
    err = float(jnp.max(jnp.abs(out - ref)))
    assert err < 5e-2, err   # bf16 matmul operands, f32 accumulation

    print("KERNEL_OK")
</pallas_src>

<mosaic_0001>
module attributes {stable_mosaic.version = 11 : i64} {
  func.func @discriminator_kernel(%arg0: i32, %arg1: memref<16x784xf32, #tpu.memory_space<vmem>>, %arg2: memref<784x512xbf16, #tpu.memory_space<vmem>>, %arg3: memref<1x512xf32, #tpu.memory_space<vmem>>, %arg4: memref<512x256xbf16, #tpu.memory_space<vmem>>, %arg5: memref<1x256xf32, #tpu.memory_space<vmem>>, %arg6: memref<256x128xbf16, #tpu.memory_space<vmem>>, %arg7: memref<1x128xf32, #tpu.memory_space<vmem>>, %arg8: memref<8x128xbf16, #tpu.memory_space<vmem>>, %arg9: memref<1x1xf32, #tpu.memory_space<vmem>>, %arg10: memref<1x16xf32, #tpu.memory_space<vmem>>) attributes {dimension_semantics = [#tpu.dimension_semantics<parallel>], iteration_bounds = array<i64: 1>, scalar_prefetch = 0 : i64, scratch_operands = 0 : i64, tpu.core_type = #tpu.core_type<tc>, window_params = [{transform_indices = @transform_0, window_bounds = array<i64: 16, 784>}, {pipeline_mode = #tpu.pipeline_mode<synchronous>, transform_indices = @transform_1, window_bounds = array<i64: 784, 512>}, {pipeline_mode = #tpu.pipeline_mode<synchronous>, transform_indices = @transform_2, window_bounds = array<i64: 1, 512>}, {pipeline_mode = #tpu.pipeline_mode<synchronous>, transform_indices = @transform_3, window_bounds = array<i64: 512, 256>}, {pipeline_mode = #tpu.pipeline_mode<synchronous>, transform_indices = @transform_4, window_bounds = array<i64: 1, 256>}, {pipeline_mode = #tpu.pipeline_mode<synchronous>, transform_indices = @transform_5, window_bounds = array<i64: 256, 128>}, {pipeline_mode = #tpu.pipeline_mode<synchronous>, transform_indices = @transform_6, window_bounds = array<i64: 1, 128>}, {pipeline_mode = #tpu.pipeline_mode<synchronous>, transform_indices = @transform_7, window_bounds = array<i64: 8, 128>}, {pipeline_mode = #tpu.pipeline_mode<synchronous>, transform_indices = @transform_8, window_bounds = array<i64: 1, 1>}, {transform_indices = @transform_9, window_bounds = array<i64: 1, 16>}]} {
    %c0 = arith.constant 0 : index
    %c0_0 = arith.constant 0 : index
    %0 = vector.load %arg1[%c0, %c0_0] : memref<16x784xf32, #tpu.memory_space<vmem>>, vector<16x784xf32>
    %1 = arith.truncf %0 : vector<16x784xf32> to vector<16x784xbf16>
    %c0_1 = arith.constant 0 : index
    %c0_2 = arith.constant 0 : index
    %2 = vector.load %arg2[%c0_1, %c0_2] : memref<784x512xbf16, #tpu.memory_space<vmem>>, vector<784x512xbf16>
    %cst = arith.constant dense<0.000000e+00> : vector<16x512xf32>
    %3 = tpu.matmul %1, %2, %cst {dimension_numbers = #tpu.dot_dimension_numbers<[1], [0], [0], [1], [0, 0, 1, 1], [], []>} : vector<16x784xbf16>, vector<784x512xbf16>, vector<16x512xf32> -> vector<16x512xf32>
    %c0_3 = arith.constant 0 : index
    %c0_4 = arith.constant 0 : index
    %4 = vector.load %arg3[%c0_3, %c0_4] : memref<1x512xf32, #tpu.memory_space<vmem>>, vector<1x512xf32>
    %5 = vector.broadcast %4 : vector<1x512xf32> to vector<16x512xf32>
    %6 = arith.addf %3, %5 : vector<16x512xf32>
    %7 = arith.truncf %6 : vector<16x512xf32> to vector<16x512xbf16>
    %c0_5 = arith.constant 0 : index
    %c0_6 = arith.constant 0 : index
    %8 = vector.load %arg4[%c0_5, %c0_6] : memref<512x256xbf16, #tpu.memory_space<vmem>>, vector<512x256xbf16>
    %cst_7 = arith.constant dense<0.000000e+00> : vector<16x256xf32>
    %9 = tpu.matmul %7, %8, %cst_7 {dimension_numbers = #tpu.dot_dimension_numbers<[1], [0], [0], [1], [0, 0, 1, 1], [], []>} : vector<16x512xbf16>, vector<512x256xbf16>, vector<16x256xf32> -> vector<16x256xf32>
    %c0_8 = arith.constant 0 : index
    %c0_9 = arith.constant 0 : index
    %10 = vector.load %arg5[%c0_8, %c0_9] : memref<1x256xf32, #tpu.memory_space<vmem>>, vector<1x256xf32>
    %11 = vector.broadcast %10 : vector<1x256xf32> to vector<16x256xf32>
    %12 = arith.addf %9, %11 : vector<16x256xf32>
    %cst_10 = arith.constant 0.000000e+00 : f32
    %13 = vector.broadcast %cst_10 : f32 to vector<16x256xf32>
    %14 = arith.maximumf %12, %13 : vector<16x256xf32>
    %15 = arith.truncf %14 : vector<16x256xf32> to vector<16x256xbf16>
    %c0_11 = arith.constant 0 : index
    %c0_12 = arith.constant 0 : index
    %16 = vector.load %arg6[%c0_11, %c0_12] : memref<256x128xbf16, #tpu.memory_space<vmem>>, vector<256x128xbf16>
    %cst_13 = arith.constant dense<0.000000e+00> : vector<16x128xf32>
    %17 = tpu.matmul %15, %16, %cst_13 {dimension_numbers = #tpu.dot_dimension_numbers<[1], [0], [0], [1], [0, 0, 1, 1], [], []>} : vector<16x256xbf16>, vector<256x128xbf16>, vector<16x128xf32> -> vector<16x128xf32>
    %c0_14 = arith.constant 0 : index
    %c0_15 = arith.constant 0 : index
    %18 = vector.load %arg7[%c0_14, %c0_15] : memref<1x128xf32, #tpu.memory_space<vmem>>, vector<1x128xf32>
    %19 = vector.broadcast %18 : vector<1x128xf32> to vector<16x128xf32>
    %20 = arith.addf %17, %19 : vector<16x128xf32>
    %cst_16 = arith.constant 0.000000e+00 : f32
    %21 = vector.broadcast %cst_16 : f32 to vector<16x128xf32>
    %22 = arith.maximumf %20, %21 : vector<16x128xf32>
    %c0_17 = arith.constant 0 : index
    %c0_18 = arith.constant 0 : index
    %23 = vector.load %arg8[%c0_17, %c0_18] : memref<8x128xbf16, #tpu.memory_space<vmem>>, vector<8x128xbf16>
    %24 = arith.truncf %22 : vector<16x128xf32> to vector<16x128xbf16>
    %25 = tpu.transpose %24, [1, 0] : vector<16x128xbf16> -> vector<128x16xbf16>
    %cst_19 = arith.constant dense<0.000000e+00> : vector<8x16xf32>
    %26 = tpu.matmul %23, %25, %cst_19 {dimension_numbers = #tpu.dot_dimension_numbers<[1], [0], [0], [1], [0, 0, 1, 1], [], []>} : vector<8x128xbf16>, vector<128x16xbf16>, vector<8x16xf32> -> vector<8x16xf32>
    %27 = vector.extract_strided_slice %26 {offsets = [0, 0], sizes = [1, 16], strides = [1, 1]} : vector<8x16xf32> to vector<1x16xf32>
    %c0_20 = arith.constant 0 : index
    %c0_21 = arith.constant 0 : index
    %28 = vector.load %arg9[%c0_20, %c0_21] : memref<1x1xf32, #tpu.memory_space<vmem>>, vector<1x1xf32>
    %29 = vector.broadcast %28 : vector<1x1xf32> to vector<1x16xf32>
    %30 = arith.addf %27, %29 : vector<1x16xf32>
    %cst_22 = arith.constant 0.000000e+00 : f32
    %31 = vector.broadcast %cst_22 : f32 to vector<1x16xf32>
    %32 = arith.subf %31, %30 : vector<1x16xf32>
    %33 = math.exp %32 : vector<1x16xf32>
    %cst_23 = arith.constant 1.000000e+00 : f32
    %34 = vector.broadcast %cst_23 : f32 to vector<1x16xf32>
    %35 = arith.addf %34, %33 : vector<1x16xf32>
    %cst_24 = arith.constant 1.000000e+00 : f32
    %36 = vector.broadcast %cst_24 : f32 to vector<1x16xf32>
    %37 = arith.divf %36, %35 : vector<1x16xf32>
    %c0_25 = arith.constant 0 : index
    %c0_26 = arith.constant 0 : index
    %38 = vector.load %arg10[%c0_25, %c0_26] : memref<1x16xf32, #tpu.memory_space<vmem>>, vector<1x16xf32>
    tpu.vector_store %arg10[%c0_25, %c0_26], %37 {strides = array<i32>} : memref<1x16xf32, #tpu.memory_space<vmem>>, vector<1x16xf32>,
    return
  }
  func.func @transform_0(%arg0: i32) -> (i32, i32) {
    %c0_i32 = arith.constant 0 : i32
    %c0_i32_0 = arith.constant 0 : i32
    return %arg0, %c0_i32 : i32, i32
  }
  func.func @transform_1(%arg0: i32) -> (i32, i32) {
    %c0_i32 = arith.constant 0 : i32
    %c0_i32_0 = arith.constant 0 : i32
    %c0_i32_1 = arith.constant 0 : i32
    return %c0_i32, %c0_i32_0 : i32, i32
  }
  func.func @transform_2(%arg0: i32) -> (i32, i32) {
    %c0_i32 = arith.constant 0 : i32
    %c0_i32_0 = arith.constant 0 : i32
    %c0_i32_1 = arith.constant 0 : i32
    return %c0_i32, %c0_i32_0 : i32, i32
  }
  func.func @transform_3(%arg0: i32) -> (i32, i32) {
    %c0_i32 = arith.constant 0 : i32
    %c0_i32_0 = arith.constant 0 : i32
    %c0_i32_1 = arith.constant 0 : i32
    return %c0_i32, %c0_i32_0 : i32, i32
  }
  func.func @transform_4(%arg0: i32) -> (i32, i32) {
    %c0_i32 = arith.constant 0 : i32
    %c0_i32_0 = arith.constant 0 : i32
    %c0_i32_1 = arith.constant 0 : i32
    return %c0_i32, %c0_i32_0 : i32, i32
  }
  func.func @transform_5(%arg0: i32) -> (i32, i32) {
    %c0_i32 = arith.constant 0 : i32
    %c0_i32_0 = arith.constant 0 : i32
    %c0_i32_1 = arith.constant 0 : i32
    return %c0_i32, %c0_i32_0 : i32, i32
  }
  func.func @transform_6(%arg0: i32) -> (i32, i32) {
    %c0_i32 = arith.constant 0 : i32
    %c0_i32_0 = arith.constant 0 : i32
    %c0_i32_1 = arith.constant 0 : i32
    return %c0_i32, %c0_i32_0 : i32, i32
  }
  func.func @transform_7(%arg0: i32) -> (i32, i32) {
    %c0_i32 = arith.constant 0 : i32
    %c0_i32_0 = arith.constant 0 : i32
    %c0_i32_1 = arith.constant 0 : i32
    return %c0_i32, %c0_i32_0 : i32, i32
  }
  func.func @transform_8(%arg0: i32) -> (i32, i32) {
    %c0_i32 = arith.constant 0 : i32
    %c0_i32_0 = arith.constant 0 : i32
    %c0_i32_1 = arith.constant 0 : i32
    return %c0_i32, %c0_i32_0 : i32, i32
  }
  func.func @transform_9(%arg0: i32) -> (i32, i32) {
    %c0_i32 = arith.constant 0 : i32
    %c0_i32_0 = arith.constant 0 : i32
    return %c0_i32, %arg0 : i32, i32
  }
}

</mosaic_0001>

<llo_original>
// kernel: tpu_custom_call.1
$region0: #{tpu_custom_call.1}
  #allocation0 [shape = 'u32[]', space=smem, size = 0x4, offset = 0x4, fixed_abs, tag = 'smem constant byte address 0x4 - core index']
  #allocation1 [shape = 'u32[144,128]{1,0:T(1,128)}', space=vmem, size = 0x12000, scoped, tag = 'internal scratch']
  #allocation2 [shape = 'f32[1,1]{1,0:T(1,128)S(1)}', space=vmem, size = 0x200, scoped, tag = 'scoped memory for tpu_custom_call.1']
  %s0 = inlined_call_operand.hbm [shape: f32[16,784], index: 0, kind: input, shape index: {}]
  %s1 = inlined_call_operand.hbm [shape: bf16[784,512], index: 1, kind: input, shape index: {}]
  %s2 = inlined_call_operand.vmem [shape: f32[1,512], index: 2, kind: input, shape index: {}]
  %s3 = inlined_call_operand.hbm [shape: bf16[512,256], index: 3, kind: input, shape index: {}]
  %s4 = inlined_call_operand.vmem [shape: f32[1,256], index: 4, kind: input, shape index: {}]
  %s5 = inlined_call_operand.hbm [shape: bf16[256,128], index: 5, kind: input, shape index: {}]
  %s6 = inlined_call_operand.vmem [shape: f32[1,128], index: 6, kind: input, shape index: {}]
  %s7 = inlined_call_operand.vmem [shape: bf16[8,128], index: 7, kind: input, shape index: {}]
  %s8 = inlined_call_operand.<no memory space> [shape: f32[1,1], index: 8, kind: input, shape index: {}]
  %s9 = inlined_call_operand.hbm [shape: f32[1,16], index: 9, kind: output, shape index: {}]
  %s10 = sld [smem:[#allocation0]]
  $region62: #{tpu_custom_call.1} parent=0
    _
  %s12 = ssub.s32 1, %s10
  %s13 = scalar_select 0, %s12, %s10
  %v14 = vstv %s8
  %15 = vst [vmem:[#allocation2] sm:$0x1] %v14
  $region1: #{tpu_custom_call.1} parent=0
    #allocation3 [shape = 'u8[57344]{0}', space=vmem, size = 0xe000, scoped, tag = 'input window, operand 0, single buffered']
    #allocation4 [shape = 's32[1]{0}', space=sflag, size = 0x4, scoped, tag = 'scoped memory for tpu_custom_call.1']
    #allocation5 [shape = 's32[1]{0}', space=sflag, size = 0x4, scoped, tag = 'scoped memory for tpu_custom_call.1']
    #allocation6 [shape = 'u8[802816]{0}', space=vmem, size = 0xc4000, scoped, tag = 'input window, operand 1, single buffered']
    #allocation7 [shape = 's32[1]{0}', space=sflag, size = 0x4, scoped, tag = 'scoped memory for tpu_custom_call.1']
    #allocation8 [shape = 'u8[262144]{0}', space=vmem, size = 0x40000, scoped, tag = 'input window, operand 3, single buffered']
    #allocation9 [shape = 'u8[65536]{0}', space=vmem, size = 0x10000, scoped, tag = 'input window, operand 5, single buffered']
    #allocation10 [shape = 's32[1]{0}', space=sflag, size = 0x4, scoped, tag = 'scoped memory for tpu_custom_call.1']
    #allocation11 [shape = 'u8[512]{0}', space=vmem, size = 0x400, scoped, tag = 'output window, operand 0, single buffered']
    %16 = vsyncpa [#allocation4], 0
    %17 = vsyncpa [#allocation7], 0
    %18 = vsyncpa [#allocation10], 0
    %19 = vsyncpa [#allocation5], 0
    // Predicated region
    $region2: #{tpu_custom_call.1} parent=1 // pred_check
      _
    $region3: #{tpu_custom_call.1} parent=1 // pred_check_branch
      %21 = sbr.rel (0) target = $region5
    $region4: #{tpu_custom_call.1} parent=1 // pred_region
      %s23 = ssub.s32 1792, 1792
      %24 = vsyncadd [#allocation4], %s23
      %s25 = sshll.u32 [#allocation3], 4
      %s26 = int_to_ptr.vmem [resolvable:$true] %s25
      %31 = dma.hbm_to_vmem [thread:$0]  %s0, 1792, %s26, [#allocation4], 896, 896, 56
    $region5: #{tpu_custom_call.1} parent=1 // pred_fallthru
      _
    // Predicated region
    $region6: #{tpu_custom_call.1} parent=1 // pred_check
      _
    $region7: #{tpu_custom_call.1} parent=1 // pred_check_branch
      %33 = sbr.rel (0) target = $region9
    $region8: #{tpu_custom_call.1} parent=1 // pred_region
      %s35 = ssub.s32 25088, 25088
      %36 = vsyncadd [#allocation7], %s35
      %s37 = sshll.u32 [#allocation6], 4
      %s38 = int_to_ptr.vmem [resolvable:$true] %s37
      %43 = dma.hbm_to_vmem [thread:$0]  %s1, 25088, %s38, [#allocation7], 256, 256, 16
    $region9: #{tpu_custom_call.1} parent=1 // pred_fallthru
      _
    // Predicated region
    $region10: #{tpu_custom_call.1} parent=1 // pred_check
      _
    $region11: #{tpu_custom_call.1} parent=1 // pred_check_branch
      %45 = sbr.rel (0) target = $region13
    $region12: #{tpu_custom_call.1} parent=1 // pred_region
      _
    $region13: #{tpu_custom_call.1} parent=1 // pred_fallthru
      _
    // Predicated region
    $region14: #{tpu_custom_call.1} parent=1 // pred_check
      _
    $region15: #{tpu_custom_call.1} parent=1 // pred_check_branch
      %47 = sbr.rel (0) target = $region17
    $region16: #{tpu_custom_call.1} parent=1 // pred_region
      %s49 = ssub.s32 8192, 8192
      %50 = vsyncadd [#allocation7], %s49
      %s51 = sshll.u32 [#allocation8], 4
      %s52 = int_to_ptr.vmem [resolvable:$true] %s51
      %57 = dma.hbm_to_vmem [thread:$0]  %s3, 8192, %s52, [#allocation7], 128, 128, 8
    $region17: #{tpu_custom_call.1} parent=1 // pred_fallthru
      _
    // Predicated region
    $region18: #{tpu_custom_call.1} parent=1 // pred_check
      _
    $region19: #{tpu_custom_call.1} parent=1 // pred_check_branch
      %59 = sbr.rel (0) target = $region21
    $region20: #{tpu_custom_call.1} parent=1 // pred_region
      _
    $region21: #{tpu_custom_call.1} parent=1 // pred_fallthru
      _
    // Predicated region
    $region22: #{tpu_custom_call.1} parent=1 // pred_check
      _
    $region23: #{tpu_custom_call.1} parent=1 // pred_check_branch
      %61 = sbr.rel (0) target = $region25
    $region24: #{tpu_custom_call.1} parent=1 // pred_region
      %s63 = ssub.s32 2048, 2048
      %64 = vsyncadd [#allocation10], %s63
      %s65 = sshll.u32 [#allocation9], 4
      %s66 = int_to_ptr.vmem [resolvable:$true] %s65
      %71 = dma.hbm_to_vmem [thread:$0]  %s5, 2048, %s66, [#allocation10], 64, 64, 4
    $region25: #{tpu_custom_call.1} parent=1 // pred_fallthru
      _
    // Predicated region
    $region26: #{tpu_custom_call.1} parent=1 // pred_check
      _
    $region27: #{tpu_custom_call.1} parent=1 // pred_check_branch
      %73 = sbr.rel (0) target = $region29
    $region28: #{tpu_custom_call.1} parent=1 // pred_region
      _
    $region29: #{tpu_custom_call.1} parent=1 // pred_fallthru
      _
    // Predicated region
    $region30: #{tpu_custom_call.1} parent=1 // pred_check
      _
    $region31: #{tpu_custom_call.1} parent=1 // pred_check_branch
      %75 = sbr.rel (0) target = $region33
    $region32: #{tpu_custom_call.1} parent=1 // pred_region
      _
    $region33: #{tpu_custom_call.1} parent=1 // pred_fallthru
      _
    // Predicated region
    $region34: #{tpu_custom_call.1} parent=1 // pred_check
      _
    $region35: #{tpu_custom_call.1} parent=1 // pred_check_branch
      %77 = sbr.rel (0) target = $region37
    $region36: #{tpu_custom_call.1} parent=1 // pred_region
      _
    $region37: #{tpu_custom_call.1} parent=1 // pred_fallthru
      _
    // Predicated region
    $region38: #{tpu_custom_call.1} parent=1 // pred_check
      _
    $region39: #{tpu_custom_call.1} parent=1 // pred_check_branch
      %79 = sbr.rel (0) target = $region41
    $region40: #{tpu_custom_call.1} parent=1 // pred_region
      %80 = dma.done [#allocation4], 1792
    $region41: #{tpu_custom_call.1} parent=1 // pred_fallthru
      _
    // Predicated region
    $region42: #{tpu_custom_call.1} parent=1 // pred_check
      _
    $region43: #{tpu_custom_call.1} parent=1 // pred_check_branch
      %82 = sbr.rel (0) target = $region45
    $region44: #{tpu_custom_call.1} parent=1 // pred_region
      %83 = dma.done [#allocation7], 25088
    $region45: #{tpu_custom_call.1} parent=1 // pred_fallthru
      _
    // Predicated region
    $region46: #{tpu_custom_call.1} parent=1 // pred_check
      _
    $region47: #{tpu_custom_call.1} parent=1 // pred_check_branch
      %85 = sbr.rel (0) target = $region49
    $region48: #{tpu_custom_call.1} parent=1 // pred_region
      %86 = dma.done [#allocation7], 8192
    $region49: #{tpu_custom_call.1} parent=1 // pred_fallthru
      _
    // Predicated region
    $region50: #{tpu_custom_call.1} parent=1 // pred_check
      _
    $region51: #{tpu_custom_call.1} parent=1 // pred_check_branch
      %88 = sbr.rel (0) target = $region53
    $region52: #{tpu_custom_call.1} parent=1 // pred_region
      %89 = dma.done [#allocation10], 2048
    $region53: #{tpu_custom_call.1} parent=1 // pred_fallthru
      _
    %v91 = vld [vmem:[#allocation3] sm:$0xff]
    %v92 = vld [vmem:[#allocation3 + $0x8] sm:$0xff]
    %v93 = vld [vmem:[#allocation3 + $0x10] sm:$0xff]
    %v94 = vld [vmem:[#allocation3 + $0x18] sm:$0xff]
    %v95 = vld [vmem:[#allocation3 + $0x20] sm:$0xff]
    %v96 = vld [vmem:[#allocation3 + $0x28] sm:$0xff]
    %v97 = vld [vmem:[#allocation3 + $0x30] sm:$0xff]
    %v98 = vld [vmem:[#allocation3 + $0x38] sm:$0xff]
    %v99 = vld [vmem:[#allocation3 + $0x40] sm:$0xff]
    %v100 = vld [vmem:[#allocation3 + $0x48] sm:$0xff]
    %v101 = vld [vmem:[#allocation3 + $0x50] sm:$0xff]
    %v102 = vld [vmem:[#allocation3 + $0x58] sm:$0xff]
    %v103 = vld [vmem:[#allocation3 + $0x60] sm:$0xff]
    %v104 = vld [vmem:[#allocation3 + $0x68] sm:$0xff]
    %v105 = vpack.c.bf16 %v98, %v91
    %v106 = vpack.c.bf16 %v99, %v92
    %v107 = vpack.c.bf16 %v100, %v93
    %v108 = vpack.c.bf16 %v101, %v94
    %v109 = vpack.c.bf16 %v102, %v95
    %v110 = vpack.c.bf16 %v103, %v96
    %v111 = vpack.c.bf16 %v104, %v97
    %v112 = vld [vmem:[#allocation6] sm:$0xff]
    %v113 = vld [vmem:[#allocation6 + $0x8] sm:$0xff]
    %v114 = vld [vmem:[#allocation6 + $0x10] sm:$0xff]
    %v115 = vld [vmem:[#allocation6 + $0x18] sm:$0xff]
    %v116 = vld [vmem:[#allocation6 + $0x20] sm:$0xff]
    %v117 = vld [vmem:[#allocation6 + $0x28] sm:$0xff]
    %v118 = vld [vmem:[#allocation6 + $0x30] sm:$0xff]
    %v119 = vld [vmem:[#allocation6 + $0x38] sm:$0xff]
    %v120 = vld [vmem:[#allocation6 + $0x40] sm:$0xff]
    %v121 = vld [vmem:[#allocation6 + $0x48] sm:$0xff]
    %v122 = vld [vmem:[#allocation6 + $0x50] sm:$0xff]
    %v123 = vld [vmem:[#allocation6 + $0x58] sm:$0xff]
    %v124 = vld [vmem:[#allocation6 + $0x60] sm:$0xff]
    %v125 = vld [vmem:[#allocation6 + $0x68] sm:$0xff]
    %v126 = vld [vmem:[#allocation6 + $0x70] sm:$0xff]
    %v127 = vld [vmem:[#allocation6 + $0x78] sm:$0xff]
    %v128 = vld [vmem:[#allocation6 + $0x80] sm:$0xff]
    %v129 = vld [vmem:[#allocation6 + $0x88] sm:$0xff]
    %v130 = vld [vmem:[#allocation6 + $0x90] sm:$0xff]
    %v131 = vld [vmem:[#allocation6 + $0x98] sm:$0xff]
    %v132 = vld [vmem:[#allocation6 + $0xa0] sm:$0xff]
    %v133 = vld [vmem:[#allocation6 + $0xa8] sm:$0xff]
    %v134 = vld [vmem:[#allocation6 + $0xb0] sm:$0xff]
    %v135 = vld [vmem:[#allocation6 + $0xb8] sm:$0xff]
    %v136 = vld [vmem:[#allocation6 + $0xc0] sm:$0xff]
    %v137 = vld [vmem:[#allocation6 + $0xc8] sm:$0xff]
    %v138 = vld [vmem:[#allocation6 + $0xd0] sm:$0xff]
    %v139 = vld [vmem:[#allocation6 + $0xd8] sm:$0xff]
    %v140 = vld [vmem:[#allocation6 + $0xe0] sm:$0xff]
    %v141 = vld [vmem:[#allocation6 + $0xe8] sm:$0xff]
    %v142 = vld [vmem:[#allocation6 + $0xf0] sm:$0xff]
    %v143 = vld [vmem:[#allocation6 + $0xf8] sm:$0xff]
    %v144 = vld [vmem:[#allocation6 + $0x100] sm:$0xff]
    %v145 = vld [vmem:[#allocation6 + $0x108] sm:$0xff]
    %v146 = vld [vmem:[#allocation6 + $0x110] sm:$0xff]
    %v147 = vld [vmem:[#allocation6 + $0x118] sm:$0xff]
    %v148 = vld [vmem:[#allocation6 + $0x120] sm:$0xff]
    %v149 = vld [vmem:[#allocation6 + $0x128] sm:$0xff]
    %v150 = vld [vmem:[#allocation6 + $0x130] sm:$0xff]
    %v151 = vld [vmem:[#allocation6 + $0x138] sm:$0xff]
    %v152 = vld [vmem:[#allocation6 + $0x140] sm:$0xff]
    %v153 = vld [vmem:[#allocation6 + $0x148] sm:$0xff]
    %v154 = vld [vmem:[#allocation6 + $0x150] sm:$0xff]
    %v155 = vld [vmem:[#allocation6 + $0x158] sm:$0xff]
    %v156 = vld [vmem:[#allocation6 + $0x160] sm:$0xff]
    %v157 = vld [vmem:[#allocation6 + $0x168] sm:$0xff]
    %v158 = vld [vmem:[#allocation6 + $0x170] sm:$0xff]
    %v159 = vld [vmem:[#allocation6 + $0x178] sm:$0xff]
    %v160 = vld [vmem:[#allocation6 + $0x180] sm:$0xff]
    %v161 = vld [vmem:[#allocation6 + $0x188] sm:$0xff]
    %v162 = vld [vmem:[#allocation6 + $0x190] sm:$0xff]
    %v163 = vld [vmem:[#allocation6 + $0x198] sm:$0xff]
    %v164 = vld [vmem:[#allocation6 + $0x1a0] sm:$0xff]
    %v165 = vld [vmem:[#allocation6 + $0x1a8] sm:$0xff]
    %v166 = vld [vmem:[#allocation6 + $0x1b0] sm:$0xff]
    %v167 = vld [vmem:[#allocation6 + $0x1b8] sm:$0xff]
    %v168 = vld [vmem:[#allocation6 + $0x1c0] sm:$0xff]
    %v169 = vld [vmem:[#allocation6 + $0x1c8] sm:$0xff]
    %v170 = vld [vmem:[#allocation6 + $0x1d0] sm:$0xff]
    %v171 = vld [vmem:[#allocation6 + $0x1d8] sm:$0xff]
    %v172 = vld [vmem:[#allocation6 + $0x1e0] sm:$0xff]
    %v173 = vld [vmem:[#allocation6 + $0x1e8] sm:$0xff]
    %v174 = vld [vmem:[#allocation6 + $0x1f0] sm:$0xff]
    %v175 = vld [vmem:[#allocation6 + $0x1f8] sm:$0xff]
    %v176 = vld [vmem:[#allocation6 + $0x200] sm:$0xff]
    %v177 = vld [vmem:[#allocation6 + $0x208] sm:$0xff]
    %v178 = vld [vmem:[#allocation6 + $0x210] sm:$0xff]
    %v179 = vld [vmem:[#allocation6 + $0x218] sm:$0xff]
    %v180 = vld [vmem:[#allocation6 + $0x220] sm:$0xff]
    %v181 = vld [vmem:[#allocation6 + $0x228] sm:$0xff]
    %v182 = vld [vmem:[#allocation6 + $0x230] sm:$0xff]
    %v183 = vld [vmem:[#allocation6 + $0x238] sm:$0xff]
    %v184 = vld [vmem:[#allocation6 + $0x240] sm:$0xff]
    %v185 = vld [vmem:[#allocation6 + $0x248] sm:$0xff]
    %v186 = vld [vmem:[#allocation6 + $0x250] sm:$0xff]
    %v187 = vld [vmem:[#allocation6 + $0x258] sm:$0xff]
    %v188 = vld [vmem:[#allocation6 + $0x260] sm:$0xff]
    %v189 = vld [vmem:[#allocation6 + $0x268] sm:$0xff]
    %v190 = vld [vmem:[#allocation6 + $0x270] sm:$0xff]
    %v191 = vld [vmem:[#allocation6 + $0x278] sm:$0xff]
    %v192 = vld [vmem:[#allocation6 + $0x280] sm:$0xff]
    %v193 = vld [vmem:[#allocation6 + $0x288] sm:$0xff]
    %v194 = vld [vmem:[#allocation6 + $0x290] sm:$0xff]
    %v195 = vld [vmem:[#allocation6 + $0x298] sm:$0xff]
    %v196 = vld [vmem:[#allocation6 + $0x2a0] sm:$0xff]
    %v197 = vld [vmem:[#allocation6 + $0x2a8] sm:$0xff]
    %v198 = vld [vmem:[#allocation6 + $0x2b0] sm:$0xff]
    %v199 = vld [vmem:[#allocation6 + $0x2b8] sm:$0xff]
    %v200 = vld [vmem:[#allocation6 + $0x2c0] sm:$0xff]
    %v201 = vld [vmem:[#allocation6 + $0x2c8] sm:$0xff]
    %v202 = vld [vmem:[#allocation6 + $0x2d0] sm:$0xff]
    %v203 = vld [vmem:[#allocation6 + $0x2d8] sm:$0xff]
    %v204 = vld [vmem:[#allocation6 + $0x2e0] sm:$0xff]
    %v205 = vld [vmem:[#allocation6 + $0x2e8] sm:$0xff]
    %v206 = vld [vmem:[#allocation6 + $0x2f0] sm:$0xff]
    %v207 = vld [vmem:[#allocation6 + $0x2f8] sm:$0xff]
    %v208 = vld [vmem:[#allocation6 + $0x300] sm:$0xff]
    %v209 = vld [vmem:[#allocation6 + $0x308] sm:$0xff]
    %v210 = vld [vmem:[#allocation6 + $0x310] sm:$0xff]
    %v211 = vld [vmem:[#allocation6 + $0x318] sm:$0xff]
    %v212 = vld [vmem:[#allocation6 + $0x320] sm:$0xff]
    %v213 = vld [vmem:[#allocation6 + $0x328] sm:$0xff]
    %v214 = vld [vmem:[#allocation6 + $0x330] sm:$0xff]
    %v215 = vld [vmem:[#allocation6 + $0x338] sm:$0xff]
    %v216 = vld [vmem:[#allocation6 + $0x340] sm:$0xff]
    %v217 = vld [vmem:[#allocation6 + $0x348] sm:$0xff]
    %v218 = vld [vmem:[#allocation6 + $0x350] sm:$0xff]
    %v219 = vld [vmem:[#allocation6 + $0x358] sm:$0xff]
    %v220 = vld [vmem:[#allocation6 + $0x360] sm:$0xff]
    %v221 = vld [vmem:[#allocation6 + $0x368] sm:$0xff]
    %v222 = vld [vmem:[#allocation6 + $0x370] sm:$0xff]
    %v223 = vld [vmem:[#allocation6 + $0x378] sm:$0xff]
    %v224 = vld [vmem:[#allocation6 + $0x380] sm:$0xff]
    %v225 = vld [vmem:[#allocation6 + $0x388] sm:$0xff]
    %v226 = vld [vmem:[#allocation6 + $0x390] sm:$0xff]
    %v227 = vld [vmem:[#allocation6 + $0x398] sm:$0xff]
    %v228 = vld [vmem:[#allocation6 + $0x3a0] sm:$0xff]
    %v229 = vld [vmem:[#allocation6 + $0x3a8] sm:$0xff]
    %v230 = vld [vmem:[#allocation6 + $0x3b0] sm:$0xff]
    %v231 = vld [vmem:[#allocation6 + $0x3b8] sm:$0xff]
    %v232 = vld [vmem:[#allocation6 + $0x3c0] sm:$0xff]
    %v233 = vld [vmem:[#allocation6 + $0x3c8] sm:$0xff]
    %v234 = vld [vmem:[#allocation6 + $0x3d0] sm:$0xff]
    %v235 = vld [vmem:[#allocation6 + $0x3d8] sm:$0xff]
    %v236 = vld [vmem:[#allocation6 + $0x3e0] sm:$0xff]
    %v237 = vld [vmem:[#allocation6 + $0x3e8] sm:$0xff]
    %v238 = vld [vmem:[#allocation6 + $0x3f0] sm:$0xff]
    %v239 = vld [vmem:[#allocation6 + $0x3f8] sm:$0xff]
    %v240 = vld [vmem:[#allocation6 + $0x400] sm:$0xff]
    %v241 = vld [vmem:[#allocation6 + $0x408] sm:$0xff]
    %v242 = vld [vmem:[#allocation6 + $0x410] sm:$0xff]
    %v243 = vld [vmem:[#allocation6 + $0x418] sm:$0xff]
    %v244 = vld [vmem:[#allocation6 + $0x420] sm:$0xff]
    %v245 = vld [vmem:[#allocation6 + $0x428] sm:$0xff]
    %v246 = vld [vmem:[#allocation6 + $0x430] sm:$0xff]
    %v247 = vld [vmem:[#allocation6 + $0x438] sm:$0xff]
    %v248 = vld [vmem:[#allocation6 + $0x440] sm:$0xff]
    %v249 = vld [vmem:[#allocation6 + $0x448] sm:$0xff]
    %v250 = vld [vmem:[#allocation6 + $0x450] sm:$0xff]
    %v251 = vld [vmem:[#allocation6 + $0x458] sm:$0xff]
    %v252 = vld [vmem:[#allocation6 + $0x460] sm:$0xff]
    %v253 = vld [vmem:[#allocation6 + $0x468] sm:$0xff]
    %v254 = vld [vmem:[#allocation6 + $0x470] sm:$0xff]
    %v255 = vld [vmem:[#allocation6 + $0x478] sm:$0xff]
    %v256 = vld [vmem:[#allocation6 + $0x480] sm:$0xff]
    %v257 = vld [vmem:[#allocation6 + $0x488] sm:$0xff]
    %v258 = vld [vmem:[#allocation6 + $0x490] sm:$0xff]
    %v259 = vld [vmem:[#allocation6 + $0x498] sm:$0xff]
    %v260 = vld [vmem:[#allocation6 + $0x4a0] sm:$0xff]
    %v261 = vld [vmem:[#allocation6 + $0x4a8] sm:$0xff]
    %v262 = vld [vmem:[#allocation6 + $0x4b0] sm:$0xff]
    %v263 = vld [vmem:[#allocation6 + $0x4b8] sm:$0xff]
    %v264 = vld [vmem:[#allocation6 + $0x4c0] sm:$0xff]
    %v265 = vld [vmem:[#allocation6 + $0x4c8] sm:$0xff]
    %v266 = vld [vmem:[#allocation6 + $0x4d0] sm:$0xff]
    %v267 = vld [vmem:[#allocation6 + $0x4d8] sm:$0xff]
    %v268 = vld [vmem:[#allocation6 + $0x4e0] sm:$0xff]
    %v269 = vld [vmem:[#allocation6 + $0x4e8] sm:$0xff]
    %v270 = vld [vmem:[#allocation6 + $0x4f0] sm:$0xff]
    %v271 = vld [vmem:[#allocation6 + $0x4f8] sm:$0xff]
    %v272 = vld [vmem:[#allocation6 + $0x500] sm:$0xff]
    %v273 = vld [vmem:[#allocation6 + $0x508] sm:$0xff]
    %v274 = vld [vmem:[#allocation6 + $0x510] sm:$0xff]
    %v275 = vld [vmem:[#allocation6 + $0x518] sm:$0xff]
    %v276 = vld [vmem:[#allocation6 + $0x520] sm:$0xff]
    %v277 = vld [vmem:[#allocation6 + $0x528] sm:$0xff]
    %v278 = vld [vmem:[#allocation6 + $0x530] sm:$0xff]
    %v279 = vld [vmem:[#allocation6 + $0x538] sm:$0xff]
    %v280 = vld [vmem:[#allocation6 + $0x540] sm:$0xff]
    %v281 = vld [vmem:[#allocation6 + $0x548] sm:$0xff]
    %v282 = vld [vmem:[#allocation6 + $0x550] sm:$0xff]
    %v283 = vld [vmem:[#allocation6 + $0x558] sm:$0xff]
    %v284 = vld [vmem:[#allocation6 + $0x560] sm:$0xff]
    %v285 = vld [vmem:[#allocation6 + $0x568] sm:$0xff]
    %v286 = vld [vmem:[#allocation6 + $0x570] sm:$0xff]
    %v287 = vld [vmem:[#allocation6 + $0x578] sm:$0xff]
    %v288 = vld [vmem:[#allocation6 + $0x580] sm:$0xff]
    %v289 = vld [vmem:[#allocation6 + $0x588] sm:$0xff]
    %v290 = vld [vmem:[#allocation6 + $0x590] sm:$0xff]
    %v291 = vld [vmem:[#allocation6 + $0x598] sm:$0xff]
    %v292 = vld [vmem:[#allocation6 + $0x5a0] sm:$0xff]
    %v293 = vld [vmem:[#allocation6 + $0x5a8] sm:$0xff]
    %v294 = vld [vmem:[#allocation6 + $0x5b0] sm:$0xff]
    %v295 = vld [vmem:[#allocation6 + $0x5b8] sm:$0xff]
    %v296 = vld [vmem:[#allocation6 + $0x5c0] sm:$0xff]
    %v297 = vld [vmem:[#allocation6 + $0x5c8] sm:$0xff]
    %v298 = vld [vmem:[#allocation6 + $0x5d0] sm:$0xff]
    %v299 = vld [vmem:[#allocation6 + $0x5d8] sm:$0xff]
    %v300 = vld [vmem:[#allocation6 + $0x5e0] sm:$0xff]
    %v301 = vld [vmem:[#allocation6 + $0x5e8] sm:$0xff]
    %v302 = vld [vmem:[#allocation6 + $0x5f0] sm:$0xff]
    %v303 = vld [vmem:[#allocation6 + $0x5f8] sm:$0xff]
    %v304 = vld [vmem:[#allocation6 + $0x600] sm:$0xff]
    %v305 = vld [vmem:[#allocation6 + $0x608] sm:$0xff]
    %v306 = vld [vmem:[#allocation6 + $0x610] sm:$0xff]
    %v307 = vld [vmem:[#allocation6 + $0x618] sm:$0xff]
    %v308 = vld [vmem:[%s2] sm:$0xf]
    %v310 = vlaneseq
    %v311 = vshrl.u32 %v310, 7
    %v312 = vsub.s32 0, %v311
    %v313 = vrot.slane %v308, %v312
    %v314 = vlaneseq
    %v315 = vshrl.u32 %v314, 7
    %v316 = vsub.s32 1, %v315
    %v317 = vrot.slane %v308, %v316
    %v318 = vlaneseq
    %v319 = vshrl.u32 %v318, 7
    %v320 = vsub.s32 2, %v319
    %v321 = vrot.slane %v308, %v320
    %v322 = vlaneseq
    %v323 = vshrl.u32 %v322, 7
    %v324 = vsub.s32 3, %v323
    %v325 = vrot.slane %v308, %v324
    %v526 = vunpack.c.l.b16 %v112
    %v527 = vunpack.c.h.b16 %v112
    %v528 = vunpack.c.l.b16 %v113
    %v529 = vunpack.c.h.b16 %v113
    %v530 = vunpack.c.l.b16 %v114
    %v531 = vunpack.c.h.b16 %v114
    %v532 = vunpack.c.l.b16 %v115
    %v533 = vunpack.c.h.b16 %v115
    %v534 = vunpack.c.l.b16 %v116
    %v535 = vunpack.c.h.b16 %v116
    %v536 = vunpack.c.l.b16 %v117
    %v537 = vunpack.c.h.b16 %v117
    %v538 = vunpack.c.l.b16 %v118
    %v539 = vunpack.c.h.b16 %v118
    %v540 = vunpack.c.l.b16 %v119
    %v541 = vunpack.c.h.b16 %v119
    %v542 = vunpack.c.l.b16 %v120
    %v543 = vunpack.c.h.b16 %v120
    %v544 = vunpack.c.l.b16 %v121
    %v545 = vunpack.c.h.b16 %v121
    %v546 = vunpack.c.l.b16 %v122
    %v547 = vunpack.c.h.b16 %v122
    %v548 = vunpack.c.l.b16 %v123
    %v549 = vunpack.c.h.b16 %v123
    %v550 = vunpack.c.l.b16 %v124
    %v551 = vunpack.c.h.b16 %v124
    %v552 = vunpack.c.l.b16 %v125
    %v553 = vunpack.c.h.b16 %v125
    %v554 = vunpack.c.l.b16 %v126
    %v555 = vunpack.c.h.b16 %v126
    %v556 = vunpack.c.l.b16 %v127
    %v557 = vunpack.c.h.b16 %v127
    %v558 = vunpack.c.l.b16 %v128
    %v559 = vunpack.c.h.b16 %v128
    %v560 = vunpack.c.l.b16 %v129
    %v561 = vunpack.c.h.b16 %v129
    %v562 = vunpack.c.l.b16 %v130
    %v563 = vunpack.c.h.b16 %v130
    %v564 = vunpack.c.l.b16 %v131
    %v565 = vunpack.c.h.b16 %v131
    %v566 = vunpack.c.l.b16 %v132
    %v567 = vunpack.c.h.b16 %v132
    %v568 = vunpack.c.l.b16 %v133
    %v569 = vunpack.c.h.b16 %v133
    %v570 = vunpack.c.l.b16 %v134
    %v571 = vunpack.c.h.b16 %v134
    %v572 = vunpack.c.l.b16 %v135
    %v573 = vunpack.c.h.b16 %v135
    %v574 = vunpack.c.l.b16 %v136
    %v575 = vunpack.c.h.b16 %v136
    %v576 = vunpack.c.l.b16 %v137
    %v577 = vunpack.c.h.b16 %v137
    %v578 = vunpack.c.l.b16 %v138
    %v579 = vunpack.c.h.b16 %v138
    %v580 = vunpack.c.l.b16 %v139
    %v581 = vunpack.c.h.b16 %v139
    %v582 = vunpack.c.l.b16 %v140
    %v583 = vunpack.c.h.b16 %v140
    %v584 = vunpack.c.l.b16 %v141
    %v585 = vunpack.c.h.b16 %v141
    %v586 = vunpack.c.l.b16 %v142
    %v587 = vunpack.c.h.b16 %v142
    %v588 = vunpack.c.l.b16 %v143
    %v589 = vunpack.c.h.b16 %v143
    %v590 = vunpack.c.l.b16 %v144
    %v591 = vunpack.c.h.b16 %v144
    %v592 = vunpack.c.l.b16 %v145
    %v593 = vunpack.c.h.b16 %v145
    %v594 = vunpack.c.l.b16 %v146
    %v595 = vunpack.c.h.b16 %v146
    %v596 = vunpack.c.l.b16 %v147
    %v597 = vunpack.c.h.b16 %v147
    %v598 = vunpack.c.l.b16 %v148
    %v599 = vunpack.c.h.b16 %v148
    %v600 = vunpack.c.l.b16 %v149
    %v601 = vunpack.c.h.b16 %v149
    %v602 = vunpack.c.l.b16 %v150
    %v603 = vunpack.c.h.b16 %v150
    %v604 = vunpack.c.l.b16 %v151
    %v605 = vunpack.c.h.b16 %v151
    %v606 = vunpack.c.l.b16 %v152
    %v607 = vunpack.c.h.b16 %v152
    %v608 = vunpack.c.l.b16 %v153
    %v609 = vunpack.c.h.b16 %v153
    %v610 = vunpack.c.l.b16 %v154
    %v611 = vunpack.c.h.b16 %v154
    %v612 = vunpack.c.l.b16 %v155
    %v613 = vunpack.c.h.b16 %v155
    %v614 = vunpack.c.l.b16 %v156
    %v615 = vunpack.c.h.b16 %v156
    %v616 = vunpack.c.l.b16 %v157
    %v617 = vunpack.c.h.b16 %v157
    %v618 = vunpack.c.l.b16 %v158
    %v619 = vunpack.c.h.b16 %v158
    %v620 = vunpack.c.l.b16 %v159
    %v621 = vunpack.c.h.b16 %v159
    %v622 = vunpack.c.l.b16 %v160
    %v623 = vunpack.c.h.b16 %v160
    %v624 = vunpack.c.l.b16 %v161
    %v625 = vunpack.c.h.b16 %v161
    %v626 = vunpack.c.l.b16 %v162
    %v627 = vunpack.c.h.b16 %v162
    %v628 = vunpack.c.l.b16 %v163
    %v629 = vunpack.c.h.b16 %v163
    %v630 = vunpack.c.l.b16 %v164
    %v631 = vunpack.c.h.b16 %v164
    %v632 = vunpack.c.l.b16 %v165
    %v633 = vunpack.c.h.b16 %v165
    %v634 = vunpack.c.l.b16 %v166
    %v635 = vunpack.c.h.b16 %v166
    %v636 = vunpack.c.l.b16 %v167
    %v637 = vunpack.c.h.b16 %v167
    %v638 = vunpack.c.l.b16 %v168
    %v639 = vunpack.c.h.b16 %v168
    %v640 = vunpack.c.l.b16 %v169
    %v641 = vunpack.c.h.b16 %v169
    %v642 = vunpack.c.l.b16 %v170
    %v643 = vunpack.c.h.b16 %v170
    %v644 = vunpack.c.l.b16 %v171
    %v645 = vunpack.c.h.b16 %v171
    %v646 = vunpack.c.l.b16 %v172
    %v647 = vunpack.c.h.b16 %v172
    %v648 = vunpack.c.l.b16 %v173
    %v649 = vunpack.c.h.b16 %v173
    %v650 = vunpack.c.l.b16 %v174
    %v651 = vunpack.c.h.b16 %v174
    %v652 = vunpack.c.l.b16 %v175
    %v653 = vunpack.c.h.b16 %v175
    %v654 = vunpack.c.l.b16 %v176
    %v655 = vunpack.c.h.b16 %v176
    %v656 = vunpack.c.l.b16 %v177
    %v657 = vunpack.c.h.b16 %v177
    %v658 = vunpack.c.l.b16 %v178
    %v659 = vunpack.c.h.b16 %v178
    %v660 = vunpack.c.l.b16 %v179
    %v661 = vunpack.c.h.b16 %v179
    %v662 = vunpack.c.l.b16 %v180
    %v663 = vunpack.c.h.b16 %v180
    %v664 = vunpack.c.l.b16 %v181
    %v665 = vunpack.c.h.b16 %v181
    %v666 = vunpack.c.l.b16 %v182
    %v667 = vunpack.c.h.b16 %v182
    %v668 = vunpack.c.l.b16 %v183
    %v669 = vunpack.c.h.b16 %v183
    %v670 = vunpack.c.l.b16 %v184
    %v671 = vunpack.c.h.b16 %v184
    %v672 = vunpack.c.l.b16 %v185
    %v673 = vunpack.c.h.b16 %v185
    %v674 = vunpack.c.l.b16 %v186
    %v675 = vunpack.c.h.b16 %v186
    %v676 = vunpack.c.l.b16 %v187
    %v677 = vunpack.c.h.b16 %v187
    %v678 = vunpack.c.l.b16 %v188
    %v679 = vunpack.c.h.b16 %v188
    %v680 = vunpack.c.l.b16 %v189
    %v681 = vunpack.c.h.b16 %v189
    %v682 = vunpack.c.l.b16 %v190
    %v683 = vunpack.c.h.b16 %v190
    %v684 = vunpack.c.l.b16 %v191
    %v685 = vunpack.c.h.b16 %v191
    %v686 = vunpack.c.l.b16 %v192
    %v687 = vunpack.c.h.b16 %v192
    %v688 = vunpack.c.l.b16 %v193
    %v689 = vunpack.c.h.b16 %v193
    %v690 = vunpack.c.l.b16 %v194
    %v691 = vunpack.c.h.b16 %v194
    %v692 = vunpack.c.l.b16 %v195
    %v693 = vunpack.c.h.b16 %v195
    %v694 = vunpack.c.l.b16 %v196
    %v695 = vunpack.c.h.b16 %v196
    %v696 = vunpack.c.l.b16 %v197
    %v697 = vunpack.c.h.b16 %v197
    %v698 = vunpack.c.l.b16 %v198
    %v699 = vunpack.c.h.b16 %v198
    %v700 = vunpack.c.l.b16 %v199
    %v701 = vunpack.c.h.b16 %v199
    %v702 = vunpack.c.l.b16 %v200
    %v703 = vunpack.c.h.b16 %v200
    %v704 = vunpack.c.l.b16 %v201
    %v705 = vunpack.c.h.b16 %v201
    %v706 = vunpack.c.l.b16 %v202
    %v707 = vunpack.c.h.b16 %v202
    %v708 = vunpack.c.l.b16 %v203
    %v709 = vunpack.c.h.b16 %v203
    %v710 = vunpack.c.l.b16 %v204
    %v711 = vunpack.c.h.b16 %v204
    %v712 = vunpack.c.l.b16 %v205
    %v713 = vunpack.c.h.b16 %v205
    %v714 = vunpack.c.l.b16 %v206
    %v715 = vunpack.c.h.b16 %v206
    %v716 = vunpack.c.l.b16 %v207
    %v717 = vunpack.c.h.b16 %v207
    %v718 = vunpack.c.l.b16 %v208
    %v719 = vunpack.c.h.b16 %v208
    %v720 = vunpack.c.l.b16 %v209
    %v721 = vunpack.c.h.b16 %v209
    %v722 = vunpack.c.l.b16 %v210
    %v723 = vunpack.c.h.b16 %v210
    %v724 = vunpack.c.l.b16 %v211
    %v725 = vunpack.c.h.b16 %v211
    %v726 = vunpack.c.l.b16 %v212
    %v727 = vunpack.c.h.b16 %v212
    %v728 = vunpack.c.l.b16 %v213
    %v729 = vunpack.c.h.b16 %v213
    %v730 = vunpack.c.l.b16 %v214
    %v731 = vunpack.c.h.b16 %v214
    %v732 = vunpack.c.l.b16 %v215
    %v733 = vunpack.c.h.b16 %v215
    %v734 = vunpack.c.l.b16 %v216
    %v735 = vunpack.c.h.b16 %v216
    %v736 = vunpack.c.l.b16 %v217
    %v737 = vunpack.c.h.b16 %v217
    %v738 = vunpack.c.l.b16 %v218
    %v739 = vunpack.c.h.b16 %v218
    %v740 = vunpack.c.l.b16 %v219
    %v741 = vunpack.c.h.b16 %v219
    %v742 = vunpack.c.l.b16 %v220
    %v743 = vunpack.c.h.b16 %v220
    %v744 = vunpack.c.l.b16 %v221
    %v745 = vunpack.c.h.b16 %v221
    %v746 = vunpack.c.l.b16 %v222
    %v747 = vunpack.c.h.b16 %v222
    %v748 = vunpack.c.l.b16 %v223
    %v749 = vunpack.c.h.b16 %v223
    %v750 = vunpack.c.l.b16 %v224
    %v751 = vunpack.c.h.b16 %v224
    %v752 = vunpack.c.l.b16 %v225
    %v753 = vunpack.c.h.b16 %v225
    %v754 = vunpack.c.l.b16 %v226
    %v755 = vunpack.c.h.b16 %v226
    %v756 = vunpack.c.l.b16 %v227
    %v757 = vunpack.c.h.b16 %v227
    %v758 = vunpack.c.l.b16 %v228
    %v759 = vunpack.c.h.b16 %v228
    %v760 = vunpack.c.l.b16 %v229
    %v761 = vunpack.c.h.b16 %v229
    %v762 = vunpack.c.l.b16 %v230
    %v763 = vunpack.c.h.b16 %v230
    %v764 = vunpack.c.l.b16 %v231
    %v765 = vunpack.c.h.b16 %v231
    %v766 = vunpack.c.l.b16 %v232
    %v767 = vunpack.c.h.b16 %v232
    %v768 = vunpack.c.l.b16 %v233
    %v769 = vunpack.c.h.b16 %v233
    %v770 = vunpack.c.l.b16 %v234
    %v771 = vunpack.c.h.b16 %v234
    %v772 = vunpack.c.l.b16 %v235
    %v773 = vunpack.c.h.b16 %v235
    %v774 = vunpack.c.l.b16 %v236
    %v775 = vunpack.c.h.b16 %v236
    %v776 = vunpack.c.l.b16 %v237
    %v777 = vunpack.c.h.b16 %v237
    %v778 = vunpack.c.l.b16 %v238
    %v779 = vunpack.c.h.b16 %v238
    %v780 = vunpack.c.l.b16 %v239
    %v781 = vunpack.c.h.b16 %v239
    %v782 = vunpack.c.l.b16 %v240
    %v783 = vunpack.c.h.b16 %v240
    %v784 = vunpack.c.l.b16 %v241
    %v785 = vunpack.c.h.b16 %v241
    %v786 = vunpack.c.l.b16 %v242
    %v787 = vunpack.c.h.b16 %v242
    %v788 = vunpack.c.l.b16 %v243
    %v789 = vunpack.c.h.b16 %v243
    %v790 = vunpack.c.l.b16 %v244
    %v791 = vunpack.c.h.b16 %v244
    %v792 = vunpack.c.l.b16 %v245
    %v793 = vunpack.c.h.b16 %v245
    %v794 = vunpack.c.l.b16 %v246
    %v795 = vunpack.c.h.b16 %v246
    %v796 = vunpack.c.l.b16 %v247
    %v797 = vunpack.c.h.b16 %v247
    %v798 = vunpack.c.l.b16 %v248
    %v799 = vunpack.c.h.b16 %v248
    %v800 = vunpack.c.l.b16 %v249
    %v801 = vunpack.c.h.b16 %v249
    %v802 = vunpack.c.l.b16 %v250
    %v803 = vunpack.c.h.b16 %v250
    %v804 = vunpack.c.l.b16 %v251
    %v805 = vunpack.c.h.b16 %v251
    %v806 = vunpack.c.l.b16 %v252
    %v807 = vunpack.c.h.b16 %v252
    %v808 = vunpack.c.l.b16 %v253
    %v809 = vunpack.c.h.b16 %v253
    %v810 = vunpack.c.l.b16 %v254
    %v811 = vunpack.c.h.b16 %v254
    %v812 = vunpack.c.l.b16 %v255
    %v813 = vunpack.c.h.b16 %v255
    %v814 = vunpack.c.l.b16 %v256
    %v815 = vunpack.c.h.b16 %v256
    %v816 = vunpack.c.l.b16 %v257
    %v817 = vunpack.c.h.b16 %v257
    %v818 = vunpack.c.l.b16 %v258
    %v819 = vunpack.c.h.b16 %v258
    %v820 = vunpack.c.l.b16 %v259
    %v821 = vunpack.c.h.b16 %v259
    %v822 = vunpack.c.l.b16 %v260
    %v823 = vunpack.c.h.b16 %v260
    %v824 = vunpack.c.l.b16 %v261
    %v825 = vunpack.c.h.b16 %v261
    %v826 = vunpack.c.l.b16 %v262
    %v827 = vunpack.c.h.b16 %v262
    %v828 = vunpack.c.l.b16 %v263
    %v829 = vunpack.c.h.b16 %v263
    %v830 = vunpack.c.l.b16 %v264
    %v831 = vunpack.c.h.b16 %v264
    %v832 = vunpack.c.l.b16 %v265
    %v833 = vunpack.c.h.b16 %v265
    %v834 = vunpack.c.l.b16 %v266
    %v835 = vunpack.c.h.b16 %v266
    %v836 = vunpack.c.l.b16 %v267
    %v837 = vunpack.c.h.b16 %v267
    %v838 = vunpack.c.l.b16 %v268
    %v839 = vunpack.c.h.b16 %v268
    %v840 = vunpack.c.l.b16 %v269
    %v841 = vunpack.c.h.b16 %v269
    %v842 = vunpack.c.l.b16 %v270
    %v843 = vunpack.c.h.b16 %v270
    %v844 = vunpack.c.l.b16 %v271
    %v845 = vunpack.c.h.b16 %v271
    %v846 = vunpack.c.l.b16 %v272
    %v847 = vunpack.c.h.b16 %v272
    %v848 = vunpack.c.l.b16 %v273
    %v849 = vunpack.c.h.b16 %v273
    %v850 = vunpack.c.l.b16 %v274
    %v851 = vunpack.c.h.b16 %v274
    %v852 = vunpack.c.l.b16 %v275
    %v853 = vunpack.c.h.b16 %v275
    %v854 = vunpack.c.l.b16 %v276
    %v855 = vunpack.c.h.b16 %v276
    %v856 = vunpack.c.l.b16 %v277
    %v857 = vunpack.c.h.b16 %v277
    %v858 = vunpack.c.l.b16 %v278
    %v859 = vunpack.c.h.b16 %v278
    %v860 = vunpack.c.l.b16 %v279
    %v861 = vunpack.c.h.b16 %v279
    %v862 = vunpack.c.l.b16 %v280
    %v863 = vunpack.c.h.b16 %v280
    %v864 = vunpack.c.l.b16 %v281
    %v865 = vunpack.c.h.b16 %v281
    %v866 = vunpack.c.l.b16 %v282
    %v867 = vunpack.c.h.b16 %v282
    %v868 = vunpack.c.l.b16 %v283
    %v869 = vunpack.c.h.b16 %v283
    %v870 = vunpack.c.l.b16 %v284
    %v871 = vunpack.c.h.b16 %v284
    %v872 = vunpack.c.l.b16 %v285
    %v873 = vunpack.c.h.b16 %v285
    %v874 = vunpack.c.l.b16 %v286
    %v875 = vunpack.c.h.b16 %v286
    %v876 = vunpack.c.l.b16 %v287
    %v877 = vunpack.c.h.b16 %v287
    %v878 = vunpack.c.l.b16 %v288
    %v879 = vunpack.c.h.b16 %v288
    %v880 = vunpack.c.l.b16 %v289
    %v881 = vunpack.c.h.b16 %v289
    %v882 = vunpack.c.l.b16 %v290
    %v883 = vunpack.c.h.b16 %v290
    %v884 = vunpack.c.l.b16 %v291
    %v885 = vunpack.c.h.b16 %v291
    %v886 = vunpack.c.l.b16 %v292
    %v887 = vunpack.c.h.b16 %v292
    %v888 = vunpack.c.l.b16 %v293
    %v889 = vunpack.c.h.b16 %v293
    %v890 = vunpack.c.l.b16 %v294
    %v891 = vunpack.c.h.b16 %v294
    %v892 = vunpack.c.l.b16 %v295
    %v893 = vunpack.c.h.b16 %v295
    %v894 = vunpack.c.l.b16 %v296
    %v895 = vunpack.c.h.b16 %v296
    %v896 = vunpack.c.l.b16 %v297
    %v897 = vunpack.c.h.b16 %v297
    %v898 = vunpack.c.l.b16 %v298
    %v899 = vunpack.c.h.b16 %v298
    %v900 = vunpack.c.l.b16 %v299
    %v901 = vunpack.c.h.b16 %v299
    %v902 = vunpack.c.l.b16 %v300
    %v903 = vunpack.c.h.b16 %v300
    %v904 = vunpack.c.l.b16 %v301
    %v905 = vunpack.c.h.b16 %v301
    %v906 = vunpack.c.l.b16 %v302
    %v907 = vunpack.c.h.b16 %v302
    %v908 = vunpack.c.l.b16 %v303
    %v909 = vunpack.c.h.b16 %v303
    %v910 = vunpack.c.l.b16 %v304
    %v911 = vunpack.c.h.b16 %v304
    %v912 = vunpack.c.l.b16 %v305
    %v913 = vunpack.c.h.b16 %v305
    %v914 = vunpack.c.l.b16 %v306
    %v915 = vunpack.c.h.b16 %v306
    %v916 = vunpack.c.l.b16 %v307
    %v917 = vunpack.c.h.b16 %v307
    %v918 = vpack.c.b16 %v530, %v526
    %v919 = vpack.c.b16 %v531, %v527
    %v920 = vpack.c.b16 %v532, %v528
    %v921 = vpack.c.b16 %v533, %v529
    %v922 = vpack.c.b16 %v538, %v534
    %v923 = vpack.c.b16 %v539, %v535
    %v924 = vpack.c.b16 %v540, %v536
    %v925 = vpack.c.b16 %v541, %v537
    %v926 = vpack.c.b16 %v546, %v542
    %v927 = vpack.c.b16 %v547, %v543
    %v928 = vpack.c.b16 %v548, %v544
    %v929 = vpack.c.b16 %v549, %v545
    %v930 = vpack.c.b16 %v554, %v550
    %v931 = vpack.c.b16 %v555, %v551
    %v932 = vpack.c.b16 %v556, %v552
    %v933 = vpack.c.b16 %v557, %v553
    %v934 = vpack.c.b16 %v562, %v558
    %v935 = vpack.c.b16 %v563, %v559
    %v936 = vpack.c.b16 %v564, %v560
    %v937 = vpack.c.b16 %v565, %v561
    %v938 = vpack.c.b16 %v570, %v566
    %v939 = vpack.c.b16 %v571, %v567
    %v940 = vpack.c.b16 %v572, %v568
    %v941 = vpack.c.b16 %v573, %v569
    %v942 = vpack.c.b16 %v578, %v574
    %v943 = vpack.c.b16 %v579, %v575
    %v944 = vpack.c.b16 %v580, %v576
    %v945 = vpack.c.b16 %v581, %v577
    %v946 = vpack.c.b16 %v586, %v582
    %v947 = vpack.c.b16 %v587, %v583
    %v948 = vpack.c.b16 %v588, %v584
    %v949 = vpack.c.b16 %v589, %v585
    %v950 = vpack.c.b16 %v594, %v590
    %v951 = vpack.c.b16 %v595, %v591
    %v952 = vpack.c.b16 %v596, %v592
    %v953 = vpack.c.b16 %v597, %v593
    %v954 = vpack.c.b16 %v602, %v598
    %v955 = vpack.c.b16 %v603, %v599
    %v956 = vpack.c.b16 %v604, %v600
    %v957 = vpack.c.b16 %v605, %v601
    %v958 = vpack.c.b16 %v610, %v606
    %v959 = vpack.c.b16 %v611, %v607
    %v960 = vpack.c.b16 %v612, %v608
    %v961 = vpack.c.b16 %v613, %v609
    %v962 = vpack.c.b16 %v618, %v614
    %v963 = vpack.c.b16 %v619, %v615
    %v964 = vpack.c.b16 %v620, %v616
    %v965 = vpack.c.b16 %v621, %v617
    %v966 = vpack.c.b16 %v626, %v622
    %v967 = vpack.c.b16 %v627, %v623
    %v968 = vpack.c.b16 %v628, %v624
    %v969 = vpack.c.b16 %v629, %v625
    %v970 = vpack.c.b16 %v634, %v630
    %v971 = vpack.c.b16 %v635, %v631
    %v972 = vpack.c.b16 %v636, %v632
    %v973 = vpack.c.b16 %v637, %v633
    %v974 = vpack.c.b16 %v642, %v638
    %v975 = vpack.c.b16 %v643, %v639
    %v976 = vpack.c.b16 %v644, %v640
    %v977 = vpack.c.b16 %v645, %v641
    %v978 = vpack.c.b16 %v650, %v646
    %v979 = vpack.c.b16 %v651, %v647
    %v980 = vpack.c.b16 %v652, %v648
    %v981 = vpack.c.b16 %v653, %v649
    %v982 = vpack.c.b16 %v658, %v654
    %v983 = vpack.c.b16 %v659, %v655
    %v984 = vpack.c.b16 %v660, %v656
    %v985 = vpack.c.b16 %v661, %v657
    %v986 = vpack.c.b16 %v666, %v662
    %v987 = vpack.c.b16 %v667, %v663
    %v988 = vpack.c.b16 %v668, %v664
    %v989 = vpack.c.b16 %v669, %v665
    %v990 = vpack.c.b16 %v674, %v670
    %v991 = vpack.c.b16 %v675, %v671
    %v992 = vpack.c.b16 %v676, %v672
    %v993 = vpack.c.b16 %v677, %v673
    %v994 = vpack.c.b16 %v682, %v678
    %v995 = vpack.c.b16 %v683, %v679
    %v996 = vpack.c.b16 %v684, %v680
    %v997 = vpack.c.b16 %v685, %v681
    %v998 = vpack.c.b16 %v690, %v686
    %v999 = vpack.c.b16 %v691, %v687
    %v1000 = vpack.c.b16 %v692, %v688
    %v1001 = vpack.c.b16 %v693, %v689
    %v1002 = vpack.c.b16 %v698, %v694
    %v1003 = vpack.c.b16 %v699, %v695
    %v1004 = vpack.c.b16 %v700, %v696
    %v1005 = vpack.c.b16 %v701, %v697
    %v1006 = vpack.c.b16 %v706, %v702
    %v1007 = vpack.c.b16 %v707, %v703
    %v1008 = vpack.c.b16 %v708, %v704
    %v1009 = vpack.c.b16 %v709, %v705
    %v1010 = vpack.c.b16 %v714, %v710
    %v1011 = vpack.c.b16 %v715, %v711
    %v1012 = vpack.c.b16 %v716, %v712
    %v1013 = vpack.c.b16 %v717, %v713
    %v1014 = vpack.c.b16 %v722, %v718
    %v1015 = vpack.c.b16 %v723, %v719
    %v1016 = vpack.c.b16 %v724, %v720
    %v1017 = vpack.c.b16 %v725, %v721
    %v1018 = vpack.c.b16 %v730, %v726
    %v1019 = vpack.c.b16 %v731, %v727
    %v1020 = vpack.c.b16 %v732, %v728
    %v1021 = vpack.c.b16 %v733, %v729
    %v1022 = vpack.c.b16 %v738, %v734
    %v1023 = vpack.c.b16 %v739, %v735
    %v1024 = vpack.c.b16 %v740, %v736
    %v1025 = vpack.c.b16 %v741, %v737
    %v1026 = vpack.c.b16 %v746, %v742
    %v1027 = vpack.c.b16 %v747, %v743
    %v1028 = vpack.c.b16 %v748, %v744
    %v1029 = vpack.c.b16 %v749, %v745
    %v1030 = vpack.c.b16 %v754, %v750
    %v1031 = vpack.c.b16 %v755, %v751
    %v1032 = vpack.c.b16 %v756, %v752
    %v1033 = vpack.c.b16 %v757, %v753
    %v1034 = vpack.c.b16 %v762, %v758
    %v1035 = vpack.c.b16 %v763, %v759
    %v1036 = vpack.c.b16 %v764, %v760
    %v1037 = vpack.c.b16 %v765, %v761
    %v1038 = vpack.c.b16 %v770, %v766
    %v1039 = vpack.c.b16 %v771, %v767
    %v1040 = vpack.c.b16 %v772, %v768
    %v1041 = vpack.c.b16 %v773, %v769
    %v1042 = vpack.c.b16 %v778, %v774
    %v1043 = vpack.c.b16 %v779, %v775
    %v1044 = vpack.c.b16 %v780, %v776
    %v1045 = vpack.c.b16 %v781, %v777
    %v1046 = vpack.c.b16 %v786, %v782
    %v1047 = vpack.c.b16 %v787, %v783
    %v1048 = vpack.c.b16 %v788, %v784
    %v1049 = vpack.c.b16 %v789, %v785
    %v1050 = vpack.c.b16 %v794, %v790
    %v1051 = vpack.c.b16 %v795, %v791
    %v1052 = vpack.c.b16 %v796, %v792
    %v1053 = vpack.c.b16 %v797, %v793
    %v1054 = vpack.c.b16 %v802, %v798
    %v1055 = vpack.c.b16 %v803, %v799
    %v1056 = vpack.c.b16 %v804, %v800
    %v1057 = vpack.c.b16 %v805, %v801
    %v1058 = vpack.c.b16 %v810, %v806
    %v1059 = vpack.c.b16 %v811, %v807
    %v1060 = vpack.c.b16 %v812, %v808
    %v1061 = vpack.c.b16 %v813, %v809
    %v1062 = vpack.c.b16 %v818, %v814
    %v1063 = vpack.c.b16 %v819, %v815
    %v1064 = vpack.c.b16 %v820, %v816
    %v1065 = vpack.c.b16 %v821, %v817
    %v1066 = vpack.c.b16 %v826, %v822
    %v1067 = vpack.c.b16 %v827, %v823
    %v1068 = vpack.c.b16 %v828, %v824
    %v1069 = vpack.c.b16 %v829, %v825
    %v1070 = vpack.c.b16 %v834, %v830
    %v1071 = vpack.c.b16 %v835, %v831
    %v1072 = vpack.c.b16 %v836, %v832
    %v1073 = vpack.c.b16 %v837, %v833
    %v1074 = vpack.c.b16 %v842, %v838
    %v1075 = vpack.c.b16 %v843, %v839
    %v1076 = vpack.c.b16 %v844, %v840
    %v1077 = vpack.c.b16 %v845, %v841
    %v1078 = vpack.c.b16 %v850, %v846
    %v1079 = vpack.c.b16 %v851, %v847
    %v1080 = vpack.c.b16 %v852, %v848
    %v1081 = vpack.c.b16 %v853, %v849
    %v1082 = vpack.c.b16 %v858, %v854
    %v1083 = vpack.c.b16 %v859, %v855
    %v1084 = vpack.c.b16 %v860, %v856
    %v1085 = vpack.c.b16 %v861, %v857
    %v1086 = vpack.c.b16 %v866, %v862
    %v1087 = vpack.c.b16 %v867, %v863
    %v1088 = vpack.c.b16 %v868, %v864
    %v1089 = vpack.c.b16 %v869, %v865
    %v1090 = vpack.c.b16 %v874, %v870
    %v1091 = vpack.c.b16 %v875, %v871
    %v1092 = vpack.c.b16 %v876, %v872
    %v1093 = vpack.c.b16 %v877, %v873
    %v1094 = vpack.c.b16 %v882, %v878
    %v1095 = vpack.c.b16 %v883, %v879
    %v1096 = vpack.c.b16 %v884, %v880
    %v1097 = vpack.c.b16 %v885, %v881
    %v1098 = vpack.c.b16 %v890, %v886
    %v1099 = vpack.c.b16 %v891, %v887
    %v1100 = vpack.c.b16 %v892, %v888
    %v1101 = vpack.c.b16 %v893, %v889
    %v1102 = vpack.c.b16 %v898, %v894
    %v1103 = vpack.c.b16 %v899, %v895
    %v1104 = vpack.c.b16 %v900, %v896
    %v1105 = vpack.c.b16 %v901, %v897
    %v1106 = vpack.c.b16 %v906, %v902
    %v1107 = vpack.c.b16 %v907, %v903
    %v1108 = vpack.c.b16 %v908, %v904
    %v1109 = vpack.c.b16 %v909, %v905
    %v1110 = vpack.c.b16 %v914, %v910
    %v1111 = vpack.c.b16 %v915, %v911
    %v1112 = vpack.c.b16 %v916, %v912
    %v1113 = vpack.c.b16 %v917, %v913
    %vm1310 = vcmask 130048
    %v1312 = vsel %vm1310, %v111, 0
    %1314 = vmatprep.subr.bf16.mxu0 %v919
    %1315 = vmatpush1.bf16.msra.mxu0 %v918
    %1316 = vmatprep.subr.bf16.mxu0 %v923
    %1317 = vmatpush1.bf16.msra.mxu0 %v922
    %1318 = vmatprep.subr.bf16.mxu0 %v927
    %1319 = vmatpush1.bf16.msra.mxu0 %v926
    %1320 = vmatprep.subr.bf16.mxu0 %v931
    %1321 = vmatpush1.bf16.msra.mxu0 %v930
    %1322 = vmatprep.subr.bf16.mxu0 %v935
    %1323 = vmatpush1.bf16.msra.mxu0 %v934
    %1324 = vmatprep.subr.bf16.mxu0 %v939
    %1325 = vmatpush1.bf16.msra.mxu0 %v938
    %1326 = vmatprep.subr.bf16.mxu0 %v943
    %1327 = vmatpush1.bf16.msra.mxu0 %v942
    %1328 = vmatprep.subr.bf16.mxu0 %v947
    %1329 = vmatpush1.bf16.msra.mxu0 %v946
    %1330 = vmatprep.subr.bf16.mxu0 %v951
    %1331 = vmatpush1.bf16.msra.mxu0 %v950
    %1332 = vmatprep.subr.bf16.mxu0 %v955
    %1333 = vmatpush1.bf16.msra.mxu0 %v954
    %1334 = vmatprep.subr.bf16.mxu0 %v959
    %1335 = vmatpush1.bf16.msra.mxu0 %v958
    %1336 = vmatprep.subr.bf16.mxu0 %v963
    %1337 = vmatpush1.bf16.msra.mxu0 %v962
    %1338 = vmatprep.subr.bf16.mxu0 %v967
    %1339 = vmatpush1.bf16.msra.mxu0 %v966
    %1340 = vmatprep.subr.bf16.mxu0 %v971
    %1341 = vmatpush1.bf16.msra.mxu0 %v970
    %1342 = vmatprep.subr.bf16.mxu0 %v975
    %1343 = vmatpush1.bf16.msra.mxu0 %v974
    %1344 = vmatprep.subr.bf16.mxu0 %v979
    %1345 = vmatpush1.bf16.msra.mxu0 %v978
    %1346 = vmatprep.mubr.bf16.mxu0 %v106
    %1347 = vmatmul.mubr.bf16.gmra.mrb[0].mxu0 %v105
    %v1348 = vpop.f32.mrb[0].mxu0
    %v1349 = vadd.f32 %v313, %v1348
    %v1350 = vpop.f32.mrb[0].mxu0
    %v1351 = vadd.f32 %v317, %v1350
    %v1352 = vpop.f32.mrb[0].mxu0
    %v1353 = vadd.f32 %v313, %v1352
    %v1354 = vpop.f32.mrb[0].mxu0
    %v1355 = vadd.f32 %v317, %v1354
    %1356 = vdwg.mxu0
    %1357 = vmatprep.subr.bf16.mxu0 %v983
    %1358 = vmatpush1.bf16.msra.mxu0 %v982
    %1359 = vmatprep.subr.bf16.mxu0 %v987
    %1360 = vmatpush1.bf16.msra.mxu0 %v986
    %1361 = vmatprep.subr.bf16.mxu0 %v991
    %1362 = vmatpush1.bf16.msra.mxu0 %v990
    %1363 = vmatprep.subr.bf16.mxu0 %v995
    %1364 = vmatpush1.bf16.msra.mxu0 %v994
    %1365 = vmatprep.subr.bf16.mxu0 %v999
    %1366 = vmatpush1.bf16.msra.mxu0 %v998
    %1367 = vmatprep.subr.bf16.mxu0 %v1003
    %1368 = vmatpush1.bf16.msra.mxu0 %v1002
    %1369 = vmatprep.subr.bf16.mxu0 %v1007
    %1370 = vmatpush1.bf16.msra.mxu0 %v1006
    %1371 = vmatprep.subr.bf16.mxu0 %v1011
    %1372 = vmatpush1.bf16.msra.mxu0 %v1010
    %1373 = vmatprep.subr.bf16.mxu0 %v1015
    %1374 = vmatpush1.bf16.msra.mxu0 %v1014
    %1375 = vmatprep.subr.bf16.mxu0 %v1019
    %1376 = vmatpush1.bf16.msra.mxu0 %v1018
    %1377 = vmatprep.subr.bf16.mxu0 %v1023
    %1378 = vmatpush1.bf16.msra.mxu0 %v1022
    %1379 = vmatprep.subr.bf16.mxu0 %v1027
    %1380 = vmatpush1.bf16.msra.mxu0 %v1026
    %1381 = vmatprep.subr.bf16.mxu0 %v1031
    %1382 = vmatpush1.bf16.msra.mxu0 %v1030
    %1383 = vmatprep.subr.bf16.mxu0 %v1035
    %1384 = vmatpush1.bf16.msra.mxu0 %v1034
    %1385 = vmatprep.subr.bf16.mxu0 %v1039
    %1386 = vmatpush1.bf16.msra.mxu0 %v1038
    %1387 = vmatprep.subr.bf16.mxu0 %v1043
    %1388 = vmatpush1.bf16.msra.mxu0 %v1042
    %1389 = vmatprep.mubr.bf16.mxu0 %v108
    %1390 = vmatmul.mubr.bf16.gmra.mrb[0].mxu0 %v107
    %v1391 = vpop.f32.mrb[0].mxu0
    %v1392 = vadd.f32 %v1349, %v1391
    %v1393 = vpop.f32.mrb[0].mxu0
    %v1394 = vadd.f32 %v1351, %v1393
    %v1395 = vpop.f32.mrb[0].mxu0
    %v1396 = vadd.f32 %v1353, %v1395
    %v1397 = vpop.f32.mrb[0].mxu0
    %v1398 = vadd.f32 %v1355, %v1397
    %1399 = vdwg.mxu0
    %1400 = vmatprep.subr.bf16.mxu0 %v1047
    %1401 = vmatpush1.bf16.msra.mxu0 %v1046
    %1402 = vmatprep.subr.bf16.mxu0 %v1051
    %1403 = vmatpush1.bf16.msra.mxu0 %v1050
    %1404 = vmatprep.subr.bf16.mxu0 %v1055
    %1405 = vmatpush1.bf16.msra.mxu0 %v1054
    %1406 = vmatprep.subr.bf16.mxu0 %v1059
    %1407 = vmatpush1.bf16.msra.mxu0 %v1058
    %1408 = vmatprep.subr.bf16.mxu0 %v1063
    %1409 = vmatpush1.bf16.msra.mxu0 %v1062
    %1410 = vmatprep.subr.bf16.mxu0 %v1067
    %1411 = vmatpush1.bf16.msra.mxu0 %v1066
    %1412 = vmatprep.subr.bf16.mxu0 %v1071
    %1413 = vmatpush1.bf16.msra.mxu0 %v1070
    %1414 = vmatprep.subr.bf16.mxu0 %v1075
    %1415 = vmatpush1.bf16.msra.mxu0 %v1074
    %1416 = vmatprep.subr.bf16.mxu0 %v1079
    %1417 = vmatpush1.bf16.msra.mxu0 %v1078
    %1418 = vmatprep.subr.bf16.mxu0 %v1083
    %1419 = vmatpush1.bf16.msra.mxu0 %v1082
    %1420 = vmatprep.subr.bf16.mxu0 %v1087
    %1421 = vmatpush1.bf16.msra.mxu0 %v1086
    %1422 = vmatprep.subr.bf16.mxu0 %v1091
    %1423 = vmatpush1.bf16.msra.mxu0 %v1090
    %1424 = vmatprep.subr.bf16.mxu0 %v1095
    %1425 = vmatpush1.bf16.msra.mxu0 %v1094
    %1426 = vmatprep.subr.bf16.mxu0 %v1099
    %1427 = vmatpush1.bf16.msra.mxu0 %v1098
    %1428 = vmatprep.subr.bf16.mxu0 %v1103
    %1429 = vmatpush1.bf16.msra.mxu0 %v1102
    %1430 = vmatprep.subr.bf16.mxu0 %v1107
    %1431 = vmatpush1.bf16.msra.mxu0 %v1106
    %1432 = vmatprep.mubr.bf16.mxu0 %v110
    %1433 = vmatmul.mubr.bf16.gmra.mrb[0].mxu0 %v109
    %v1434 = vpop.f32.mrb[0].mxu0
    %v1435 = vadd.f32 %v1392, %v1434
    %v1436 = vpop.f32.mrb[0].mxu0
    %v1437 = vadd.f32 %v1394, %v1436
    %v1438 = vpop.f32.mrb[0].mxu0
    %v1439 = vadd.f32 %v1396, %v1438
    %v1440 = vpop.f32.mrb[0].mxu0
    %v1441 = vadd.f32 %v1398, %v1440
    %1442 = vdwg.mxu0
    %1443 = vmatprep.subr.bf16.mxu0 %v1111
    %1444 = vmatpush1.bf16.msra.mxu0 %v1110
    %1445 = vmatprep.subr.bf16.mxu0 0
    %1446 = vmatpush1.bf16.msra.mxu0 0
    %1447 = vmatprep.subr.bf16.mxu0 0
    %1448 = vmatpush1.bf16.msra.mxu0 0
    %1449 = vmatprep.subr.bf16.mxu0 0
    %1450 = vmatpush1.bf16.msra.mxu0 0
    %1451 = vmatprep.subr.bf16.mxu0 0
    %1452 = vmatpush1.bf16.msra.mxu0 0
    %1453 = vmatprep.subr.bf16.mxu0 0
    %1454 = vmatpush1.bf16.msra.mxu0 0
    %1455 = vmatprep.subr.bf16.mxu0 0
    %1456 = vmatpush1.bf16.msra.mxu0 0
    %1457 = vmatprep.subr.bf16.mxu0 0
    %1458 = vmatpush1.bf16.msra.mxu0 0
    %1459 = vmatprep.subr.bf16.mxu0 0
    %1460 = vmatpush1.bf16.msra.mxu0 0
    %1461 = vmatprep.subr.bf16.mxu0 0
    %1462 = vmatpush1.bf16.msra.mxu0 0
    %1463 = vmatprep.subr.bf16.mxu0 0
    %1464 = vmatpush1.bf16.msra.mxu0 0
    %1465 = vmatprep.subr.bf16.mxu0 0
    %1466 = vmatpush1.bf16.msra.mxu0 0
    %1467 = vmatprep.subr.bf16.mxu0 0
    %1468 = vmatpush1.bf16.msra.mxu0 0
    %1469 = vmatprep.subr.bf16.mxu0 0
    %1470 = vmatpush1.bf16.msra.mxu0 0
    %1471 = vmatprep.subr.bf16.mxu0 0
    %1472 = vmatpush1.bf16.msra.mxu0 0
    %1473 = vmatprep.subr.bf16.mxu0 0
    %1474 = vmatpush1.bf16.msra.mxu0 0
    %1475 = vmatprep.mubr.bf16.mxu0 0
    %1476 = vmatmul.mubr.bf16.gmra.mrb[0].mxu0 %v1312
    %v1477 = vpop.f32.mrb[0].mxu0
    %v1478 = vadd.f32 %v1435, %v1477
    %v1479 = vpop.f32.mrb[0].mxu0
    %v1480 = vadd.f32 %v1437, %v1479
    %v1481 = vpop.f32.mrb[0].mxu0
    %v1482 = vadd.f32 %v1439, %v1481
    %v1483 = vpop.f32.mrb[0].mxu0
    %v1484 = vadd.f32 %v1441, %v1483
    %1485 = vdwg.mxu0
    %1486 = vmatprep.subr.bf16.mxu0 %v921
    %1487 = vmatpush1.bf16.msra.mxu0 %v920
    %1488 = vmatprep.subr.bf16.mxu0 %v925
    %1489 = vmatpush1.bf16.msra.mxu0 %v924
    %1490 = vmatprep.subr.bf16.mxu0 %v929
    %1491 = vmatpush1.bf16.msra.mxu0 %v928
    %1492 = vmatprep.subr.bf16.mxu0 %v933
    %1493 = vmatpush1.bf16.msra.mxu0 %v932
    %1494 = vmatprep.subr.bf16.mxu0 %v937
    %1495 = vmatpush1.bf16.msra.mxu0 %v936
    %1496 = vmatprep.subr.bf16.mxu0 %v941
    %1497 = vmatpush1.bf16.msra.mxu0 %v940
    %1498 = vmatprep.subr.bf16.mxu0 %v945
    %1499 = vmatpush1.bf16.msra.mxu0 %v944
    %1500 = vmatprep.subr.bf16.mxu0 %v949
    %1501 = vmatpush1.bf16.msra.mxu0 %v948
    %1502 = vmatprep.subr.bf16.mxu0 %v953
    %1503 = vmatpush1.bf16.msra.mxu0 %v952
    %1504 = vmatprep.subr.bf16.mxu0 %v957
    %1505 = vmatpush1.bf16.msra.mxu0 %v956
    %1506 = vmatprep.subr.bf16.mxu0 %v961
    %1507 = vmatpush1.bf16.msra.mxu0 %v960
    %1508 = vmatprep.subr.bf16.mxu0 %v965
    %1509 = vmatpush1.bf16.msra.mxu0 %v964
    %1510 = vmatprep.subr.bf16.mxu0 %v969
    %1511 = vmatpush1.bf16.msra.mxu0 %v968
    %1512 = vmatprep.subr.bf16.mxu0 %v973
    %1513 = vmatpush1.bf16.msra.mxu0 %v972
    %1514 = vmatprep.subr.bf16.mxu0 %v977
    %1515 = vmatpush1.bf16.msra.mxu0 %v976
    %1516 = vmatprep.subr.bf16.mxu0 %v981
    %1517 = vmatpush1.bf16.msra.mxu0 %v980
    %1518 = vmatprep.mubr.bf16.mxu0 %v106
    %1519 = vmatmul.mubr.bf16.gmra.mrb[0].mxu0 %v105
    %v1520 = vpop.f32.mrb[0].mxu0
    %v1521 = vadd.f32 %v321, %v1520
    %v1522 = vpop.f32.mrb[0].mxu0
    %v1523 = vadd.f32 %v325, %v1522
    %v1524 = vpop.f32.mrb[0].mxu0
    %v1525 = vadd.f32 %v321, %v1524
    %v1526 = vpop.f32.mrb[0].mxu0
    %v1527 = vadd.f32 %v325, %v1526
    %1528 = vdwg.mxu0
    %1529 = vmatprep.subr.bf16.mxu0 %v985
    %1530 = vmatpush1.bf16.msra.mxu0 %v984
    %1531 = vmatprep.subr.bf16.mxu0 %v989
    %1532 = vmatpush1.bf16.msra.mxu0 %v988
    %1533 = vmatprep.subr.bf16.mxu0 %v993
    %1534 = vmatpush1.bf16.msra.mxu0 %v992
    %1535 = vmatprep.subr.bf16.mxu0 %v997
    %1536 = vmatpush1.bf16.msra.mxu0 %v996
    %1537 = vmatprep.subr.bf16.mxu0 %v1001
    %1538 = vmatpush1.bf16.msra.mxu0 %v1000
    %1539 = vmatprep.subr.bf16.mxu0 %v1005
    %1540 = vmatpush1.bf16.msra.mxu0 %v1004
    %1541 = vmatprep.subr.bf16.mxu0 %v1009
    %1542 = vmatpush1.bf16.msra.mxu0 %v1008
    %1543 = vmatprep.subr.bf16.mxu0 %v1013
    %1544 = vmatpush1.bf16.msra.mxu0 %v1012
    %1545 = vmatprep.subr.bf16.mxu0 %v1017
    %1546 = vmatpush1.bf16.msra.mxu0 %v1016
    %1547 = vmatprep.subr.bf16.mxu0 %v1021
    %1548 = vmatpush1.bf16.msra.mxu0 %v1020
    %1549 = vmatprep.subr.bf16.mxu0 %v1025
    %1550 = vmatpush1.bf16.msra.mxu0 %v1024
    %1551 = vmatprep.subr.bf16.mxu0 %v1029
    %1552 = vmatpush1.bf16.msra.mxu0 %v1028
    %1553 = vmatprep.subr.bf16.mxu0 %v1033
    %1554 = vmatpush1.bf16.msra.mxu0 %v1032
    %1555 = vmatprep.subr.bf16.mxu0 %v1037
    %1556 = vmatpush1.bf16.msra.mxu0 %v1036
    %1557 = vmatprep.subr.bf16.mxu0 %v1041
    %1558 = vmatpush1.bf16.msra.mxu0 %v1040
    %1559 = vmatprep.subr.bf16.mxu0 %v1045
    %1560 = vmatpush1.bf16.msra.mxu0 %v1044
    %1561 = vmatprep.mubr.bf16.mxu0 %v108
    %1562 = vmatmul.mubr.bf16.gmra.mrb[0].mxu0 %v107
    %v1563 = vpop.f32.mrb[0].mxu0
    %v1564 = vadd.f32 %v1521, %v1563
    %v1565 = vpop.f32.mrb[0].mxu0
    %v1566 = vadd.f32 %v1523, %v1565
    %v1567 = vpop.f32.mrb[0].mxu0
    %v1568 = vadd.f32 %v1525, %v1567
    %v1569 = vpop.f32.mrb[0].mxu0
    %v1570 = vadd.f32 %v1527, %v1569
    %1571 = vdwg.mxu0
    %1572 = vmatprep.subr.bf16.mxu0 %v1049
    %1573 = vmatpush1.bf16.msra.mxu0 %v1048
    %1574 = vmatprep.subr.bf16.mxu0 %v1053
    %1575 = vmatpush1.bf16.msra.mxu0 %v1052
    %1576 = vmatprep.subr.bf16.mxu0 %v1057
    %1577 = vmatpush1.bf16.msra.mxu0 %v1056
    %1578 = vmatprep.subr.bf16.mxu0 %v1061
    %1579 = vmatpush1.bf16.msra.mxu0 %v1060
    %1580 = vmatprep.subr.bf16.mxu0 %v1065
    %1581 = vmatpush1.bf16.msra.mxu0 %v1064
    %1582 = vmatprep.subr.bf16.mxu0 %v1069
    %1583 = vmatpush1.bf16.msra.mxu0 %v1068
    %1584 = vmatprep.subr.bf16.mxu0 %v1073
    %1585 = vmatpush1.bf16.msra.mxu0 %v1072
    %1586 = vmatprep.subr.bf16.mxu0 %v1077
    %1587 = vmatpush1.bf16.msra.mxu0 %v1076
    %1588 = vmatprep.subr.bf16.mxu0 %v1081
    %1589 = vmatpush1.bf16.msra.mxu0 %v1080
    %1590 = vmatprep.subr.bf16.mxu0 %v1085
    %1591 = vmatpush1.bf16.msra.mxu0 %v1084
    %1592 = vmatprep.subr.bf16.mxu0 %v1089
    %1593 = vmatpush1.bf16.msra.mxu0 %v1088
    %1594 = vmatprep.subr.bf16.mxu0 %v1093
    %1595 = vmatpush1.bf16.msra.mxu0 %v1092
    %1596 = vmatprep.subr.bf16.mxu0 %v1097
    %1597 = vmatpush1.bf16.msra.mxu0 %v1096
    %1598 = vmatprep.subr.bf16.mxu0 %v1101
    %1599 = vmatpush1.bf16.msra.mxu0 %v1100
    %1600 = vmatprep.subr.bf16.mxu0 %v1105
    %1601 = vmatpush1.bf16.msra.mxu0 %v1104
    %1602 = vmatprep.subr.bf16.mxu0 %v1109
    %1603 = vmatpush1.bf16.msra.mxu0 %v1108
    %1604 = vmatprep.mubr.bf16.mxu0 %v110
    %1605 = vmatmul.mubr.bf16.gmra.mrb[0].mxu0 %v109
    %v1606 = vpop.f32.mrb[0].mxu0
    %v1607 = vadd.f32 %v1564, %v1606
    %v1608 = vpop.f32.mrb[0].mxu0
    %v1609 = vadd.f32 %v1566, %v1608
    %v1610 = vpop.f32.mrb[0].mxu0
    %v1611 = vadd.f32 %v1568, %v1610
    %v1612 = vpop.f32.mrb[0].mxu0
    %v1613 = vadd.f32 %v1570, %v1612
    %1614 = vdwg.mxu0
    %1615 = vmatprep.subr.bf16.mxu0 %v1113
    %1616 = vmatpush1.bf16.msra.mxu0 %v1112
    %1617 = vmatprep.subr.bf16.mxu0 0
    %1618 = vmatpush1.bf16.msra.mxu0 0
    %1619 = vmatprep.subr.bf16.mxu0 0
    %1620 = vmatpush1.bf16.msra.mxu0 0
    %1621 = vmatprep.subr.bf16.mxu0 0
    %1622 = vmatpush1.bf16.msra.mxu0 0
    %1623 = vmatprep.subr.bf16.mxu0 0
    %1624 = vmatpush1.bf16.msra.mxu0 0
    %1625 = vmatprep.subr.bf16.mxu0 0
    %1626 = vmatpush1.bf16.msra.mxu0 0
    %1627 = vmatprep.subr.bf16.mxu0 0
    %1628 = vmatpush1.bf16.msra.mxu0 0
    %1629 = vmatprep.subr.bf16.mxu0 0
    %1630 = vmatpush1.bf16.msra.mxu0 0
    %1631 = vmatprep.subr.bf16.mxu0 0
    %1632 = vmatpush1.bf16.msra.mxu0 0
    %1633 = vmatprep.subr.bf16.mxu0 0
    %1634 = vmatpush1.bf16.msra.mxu0 0
    %1635 = vmatprep.subr.bf16.mxu0 0
    %1636 = vmatpush1.bf16.msra.mxu0 0
    %1637 = vmatprep.subr.bf16.mxu0 0
    %1638 = vmatpush1.bf16.msra.mxu0 0
    %1639 = vmatprep.subr.bf16.mxu0 0
    %1640 = vmatpush1.bf16.msra.mxu0 0
    %1641 = vmatprep.subr.bf16.mxu0 0
    %1642 = vmatpush1.bf16.msra.mxu0 0
    %1643 = vmatprep.subr.bf16.mxu0 0
    %1644 = vmatpush1.bf16.msra.mxu0 0
    %1645 = vmatprep.subr.bf16.mxu0 0
    %1646 = vmatpush1.bf16.msra.mxu0 0
    %1647 = vmatprep.mubr.bf16.mxu0 0
    %1648 = vmatmul.mubr.bf16.gmra.mrb[0].mxu0 %v1312
    %v1649 = vpop.f32.mrb[0].mxu0
    %v1650 = vadd.f32 %v1607, %v1649
    %v1651 = vpop.f32.mrb[0].mxu0
    %v1652 = vadd.f32 %v1609, %v1651
    %v1653 = vpop.f32.mrb[0].mxu0
    %v1654 = vadd.f32 %v1611, %v1653
    %v1655 = vpop.f32.mrb[0].mxu0
    %v1656 = vadd.f32 %v1613, %v1655
    %1657 = vdwg.mxu0
    %v1658 = vpack.c.bf16 %v1482, %v1478
    %v1659 = vpack.c.bf16 %v1484, %v1480
    %v1660 = vpack.c.bf16 %v1654, %v1650
    %v1661 = vpack.c.bf16 %v1656, %v1652
    %v1662 = vld [vmem:[#allocation8] sm:$0xff]
    %v1663 = vld [vmem:[#allocation8 + $0x8] sm:$0xff]
    %v1664 = vld [vmem:[#allocation8 + $0x10] sm:$0xff]
    %v1665 = vld [vmem:[#allocation8 + $0x18] sm:$0xff]
    %v1666 = vld [vmem:[#allocation8 + $0x20] sm:$0xff]
    %v1667 = vld [vmem:[#allocation8 + $0x28] sm:$0xff]
    %v1668 = vld [vmem:[#allocation8 + $0x30] sm:$0xff]
    %v1669 = vld [vmem:[#allocation8 + $0x38] sm:$0xff]
    %v1670 = vld [vmem:[#allocation8 + $0x40] sm:$0xff]
    %v1671 = vld [vmem:[#allocation8 + $0x48] sm:$0xff]
    %v1672 = vld [vmem:[#allocation8 + $0x50] sm:$0xff]
    %v1673 = vld [vmem:[#allocation8 + $0x58] sm:$0xff]
    %v1674 = vld [vmem:[#allocation8 + $0x60] sm:$0xff]
    %v1675 = vld [vmem:[#allocation8 + $0x68] sm:$0xff]
    %v1676 = vld [vmem:[#allocation8 + $0x70] sm:$0xff]
    %v1677 = vld [vmem:[#allocation8 + $0x78] sm:$0xff]
    %v1678 = vld [vmem:[#allocation8 + $0x80] sm:$0xff]
    %v1679 = vld [vmem:[#allocation8 + $0x88] sm:$0xff]
    %v1680 = vld [vmem:[#allocation8 + $0x90] sm:$0xff]
    %v1681 = vld [vmem:[#allocation8 + $0x98] sm:$0xff]
    %v1682 = vld [vmem:[#allocation8 + $0xa0] sm:$0xff]
    %v1683 = vld [vmem:[#allocation8 + $0xa8] sm:$0xff]
    %v1684 = vld [vmem:[#allocation8 + $0xb0] sm:$0xff]
    %v1685 = vld [vmem:[#allocation8 + $0xb8] sm:$0xff]
    %v1686 = vld [vmem:[#allocation8 + $0xc0] sm:$0xff]
    %v1687 = vld [vmem:[#allocation8 + $0xc8] sm:$0xff]
    %v1688 = vld [vmem:[#allocation8 + $0xd0] sm:$0xff]
    %v1689 = vld [vmem:[#allocation8 + $0xd8] sm:$0xff]
    %v1690 = vld [vmem:[#allocation8 + $0xe0] sm:$0xff]
    %v1691 = vld [vmem:[#allocation8 + $0xe8] sm:$0xff]
    %v1692 = vld [vmem:[#allocation8 + $0xf0] sm:$0xff]
    %v1693 = vld [vmem:[#allocation8 + $0xf8] sm:$0xff]
    %v1694 = vld [vmem:[#allocation8 + $0x100] sm:$0xff]
    %v1695 = vld [vmem:[#allocation8 + $0x108] sm:$0xff]
    %v1696 = vld [vmem:[#allocation8 + $0x110] sm:$0xff]
    %v1697 = vld [vmem:[#allocation8 + $0x118] sm:$0xff]
    %v1698 = vld [vmem:[#allocation8 + $0x120] sm:$0xff]
    %v1699 = vld [vmem:[#allocation8 + $0x128] sm:$0xff]
    %v1700 = vld [vmem:[#allocation8 + $0x130] sm:$0xff]
    %v1701 = vld [vmem:[#allocation8 + $0x138] sm:$0xff]
    %v1702 = vld [vmem:[#allocation8 + $0x140] sm:$0xff]
    %v1703 = vld [vmem:[#allocation8 + $0x148] sm:$0xff]
    %v1704 = vld [vmem:[#allocation8 + $0x150] sm:$0xff]
    %v1705 = vld [vmem:[#allocation8 + $0x158] sm:$0xff]
    %v1706 = vld [vmem:[#allocation8 + $0x160] sm:$0xff]
    %v1707 = vld [vmem:[#allocation8 + $0x168] sm:$0xff]
    %v1708 = vld [vmem:[#allocation8 + $0x170] sm:$0xff]
    %v1709 = vld [vmem:[#allocation8 + $0x178] sm:$0xff]
    %v1710 = vld [vmem:[#allocation8 + $0x180] sm:$0xff]
    %v1711 = vld [vmem:[#allocation8 + $0x188] sm:$0xff]
    %v1712 = vld [vmem:[#allocation8 + $0x190] sm:$0xff]
    %v1713 = vld [vmem:[#allocation8 + $0x198] sm:$0xff]
    %v1714 = vld [vmem:[#allocation8 + $0x1a0] sm:$0xff]
    %v1715 = vld [vmem:[#allocation8 + $0x1a8] sm:$0xff]
    %v1716 = vld [vmem:[#allocation8 + $0x1b0] sm:$0xff]
    %v1717 = vld [vmem:[#allocation8 + $0x1b8] sm:$0xff]
    %v1718 = vld [vmem:[#allocation8 + $0x1c0] sm:$0xff]
    %v1719 = vld [vmem:[#allocation8 + $0x1c8] sm:$0xff]
    %v1720 = vld [vmem:[#allocation8 + $0x1d0] sm:$0xff]
    %v1721 = vld [vmem:[#allocation8 + $0x1d8] sm:$0xff]
    %v1722 = vld [vmem:[#allocation8 + $0x1e0] sm:$0xff]
    %v1723 = vld [vmem:[#allocation8 + $0x1e8] sm:$0xff]
    %v1724 = vld [vmem:[#allocation8 + $0x1f0] sm:$0xff]
    %v1725 = vld [vmem:[#allocation8 + $0x1f8] sm:$0xff]
    %v1726 = vld [vmem:[%s4] sm:$0x3]
    %v1728 = vlaneseq
    %v1729 = vshrl.u32 %v1728, 7
    %v1730 = vsub.s32 0, %v1729
    %v1731 = vrot.slane %v1726, %v1730
    %v1732 = vlaneseq
    %v1733 = vshrl.u32 %v1732, 7
    %v1734 = vsub.s32 1, %v1733
    %v1735 = vrot.slane %v1726, %v1734
    %v1802 = vunpack.c.l.b16 %v1662
    %v1803 = vunpack.c.h.b16 %v1662
    %v1804 = vunpack.c.l.b16 %v1663
    %v1805 = vunpack.c.h.b16 %v1663
    %v1806 = vunpack.c.l.b16 %v1664
    %v1807 = vunpack.c.h.b16 %v1664
    %v1808 = vunpack.c.l.b16 %v1665
    %v1809 = vunpack.c.h.b16 %v1665
    %v1810 = vunpack.c.l.b16 %v1666
    %v1811 = vunpack.c.h.b16 %v1666
    %v1812 = vunpack.c.l.b16 %v1667
    %v1813 = vunpack.c.h.b16 %v1667
    %v1814 = vunpack.c.l.b16 %v1668
    %v1815 = vunpack.c.h.b16 %v1668
    %v1816 = vunpack.c.l.b16 %v1669
    %v1817 = vunpack.c.h.b16 %v1669
    %v1818 = vunpack.c.l.b16 %v1670
    %v1819 = vunpack.c.h.b16 %v1670
    %v1820 = vunpack.c.l.b16 %v1671
    %v1821 = vunpack.c.h.b16 %v1671
    %v1822 = vunpack.c.l.b16 %v1672
    %v1823 = vunpack.c.h.b16 %v1672
    %v1824 = vunpack.c.l.b16 %v1673
    %v1825 = vunpack.c.h.b16 %v1673
    %v1826 = vunpack.c.l.b16 %v1674
    %v1827 = vunpack.c.h.b16 %v1674
    %v1828 = vunpack.c.l.b16 %v1675
    %v1829 = vunpack.c.h.b16 %v1675
    %v1830 = vunpack.c.l.b16 %v1676
    %v1831 = vunpack.c.h.b16 %v1676
    %v1832 = vunpack.c.l.b16 %v1677
    %v1833 = vunpack.c.h.b16 %v1677
    %v1834 = vunpack.c.l.b16 %v1678
    %v1835 = vunpack.c.h.b16 %v1678
    %v1836 = vunpack.c.l.b16 %v1679
    %v1837 = vunpack.c.h.b16 %v1679
    %v1838 = vunpack.c.l.b16 %v1680
    %v1839 = vunpack.c.h.b16 %v1680
    %v1840 = vunpack.c.l.b16 %v1681
    %v1841 = vunpack.c.h.b16 %v1681
    %v1842 = vunpack.c.l.b16 %v1682
    %v1843 = vunpack.c.h.b16 %v1682
    %v1844 = vunpack.c.l.b16 %v1683
    %v1845 = vunpack.c.h.b16 %v1683
    %v1846 = vunpack.c.l.b16 %v1684
    %v1847 = vunpack.c.h.b16 %v1684
    %v1848 = vunpack.c.l.b16 %v1685
    %v1849 = vunpack.c.h.b16 %v1685
    %v1850 = vunpack.c.l.b16 %v1686
    %v1851 = vunpack.c.h.b16 %v1686
    %v1852 = vunpack.c.l.b16 %v1687
    %v1853 = vunpack.c.h.b16 %v1687
    %v1854 = vunpack.c.l.b16 %v1688
    %v1855 = vunpack.c.h.b16 %v1688
    %v1856 = vunpack.c.l.b16 %v1689
    %v1857 = vunpack.c.h.b16 %v1689
    %v1858 = vunpack.c.l.b16 %v1690
    %v1859 = vunpack.c.h.b16 %v1690
    %v1860 = vunpack.c.l.b16 %v1691
    %v1861 = vunpack.c.h.b16 %v1691
    %v1862 = vunpack.c.l.b16 %v1692
    %v1863 = vunpack.c.h.b16 %v1692
    %v1864 = vunpack.c.l.b16 %v1693
    %v1865 = vunpack.c.h.b16 %v1693
    %v1866 = vunpack.c.l.b16 %v1694
    %v1867 = vunpack.c.h.b16 %v1694
    %v1868 = vunpack.c.l.b16 %v1695
    %v1869 = vunpack.c.h.b16 %v1695
    %v1870 = vunpack.c.l.b16 %v1696
    %v1871 = vunpack.c.h.b16 %v1696
    %v1872 = vunpack.c.l.b16 %v1697
    %v1873 = vunpack.c.h.b16 %v1697
    %v1874 = vunpack.c.l.b16 %v1698
    %v1875 = vunpack.c.h.b16 %v1698
    %v1876 = vunpack.c.l.b16 %v1699
    %v1877 = vunpack.c.h.b16 %v1699
    %v1878 = vunpack.c.l.b16 %v1700
    %v1879 = vunpack.c.h.b16 %v1700
    %v1880 = vunpack.c.l.b16 %v1701
    %v1881 = vunpack.c.h.b16 %v1701
    %v1882 = vunpack.c.l.b16 %v1702
    %v1883 = vunpack.c.h.b16 %v1702
    %v1884 = vunpack.c.l.b16 %v1703
    %v1885 = vunpack.c.h.b16 %v1703
    %v1886 = vunpack.c.l.b16 %v1704
    %v1887 = vunpack.c.h.b16 %v1704
    %v1888 = vunpack.c.l.b16 %v1705
    %v1889 = vunpack.c.h.b16 %v1705
    %v1890 = vunpack.c.l.b16 %v1706
    %v1891 = vunpack.c.h.b16 %v1706
    %v1892 = vunpack.c.l.b16 %v1707
    %v1893 = vunpack.c.h.b16 %v1707
    %v1894 = vunpack.c.l.b16 %v1708
    %v1895 = vunpack.c.h.b16 %v1708
    %v1896 = vunpack.c.l.b16 %v1709
    %v1897 = vunpack.c.h.b16 %v1709
    %v1898 = vunpack.c.l.b16 %v1710
    %v1899 = vunpack.c.h.b16 %v1710
    %v1900 = vunpack.c.l.b16 %v1711
    %v1901 = vunpack.c.h.b16 %v1711
    %v1902 = vunpack.c.l.b16 %v1712
    %v1903 = vunpack.c.h.b16 %v1712
    %v1904 = vunpack.c.l.b16 %v1713
    %v1905 = vunpack.c.h.b16 %v1713
    %v1906 = vunpack.c.l.b16 %v1714
    %v1907 = vunpack.c.h.b16 %v1714
    %v1908 = vunpack.c.l.b16 %v1715
    %v1909 = vunpack.c.h.b16 %v1715
    %v1910 = vunpack.c.l.b16 %v1716
    %v1911 = vunpack.c.h.b16 %v1716
    %v1912 = vunpack.c.l.b16 %v1717
    %v1913 = vunpack.c.h.b16 %v1717
    %v1914 = vunpack.c.l.b16 %v1718
    %v1915 = vunpack.c.h.b16 %v1718
    %v1916 = vunpack.c.l.b16 %v1719
    %v1917 = vunpack.c.h.b16 %v1719
    %v1918 = vunpack.c.l.b16 %v1720
    %v1919 = vunpack.c.h.b16 %v1720
    %v1920 = vunpack.c.l.b16 %v1721
    %v1921 = vunpack.c.h.b16 %v1721
    %v1922 = vunpack.c.l.b16 %v1722
    %v1923 = vunpack.c.h.b16 %v1722
    %v1924 = vunpack.c.l.b16 %v1723
    %v1925 = vunpack.c.h.b16 %v1723
    %v1926 = vunpack.c.l.b16 %v1724
    %v1927 = vunpack.c.h.b16 %v1724
    %v1928 = vunpack.c.l.b16 %v1725
    %v1929 = vunpack.c.h.b16 %v1725
    %v1930 = vpack.c.b16 %v1804, %v1802
    %v1931 = vpack.c.b16 %v1805, %v1803
    %v1932 = vpack.c.b16 %v1808, %v1806
    %v1933 = vpack.c.b16 %v1809, %v1807
    %v1934 = vpack.c.b16 %v1812, %v1810
    %v1935 = vpack.c.b16 %v1813, %v1811
    %v1936 = vpack.c.b16 %v1816, %v1814
    %v1937 = vpack.c.b16 %v1817, %v1815
    %v1938 = vpack.c.b16 %v1820, %v1818
    %v1939 = vpack.c.b16 %v1821, %v1819
    %v1940 = vpack.c.b16 %v1824, %v1822
    %v1941 = vpack.c.b16 %v1825, %v1823
    %v1942 = vpack.c.b16 %v1828, %v1826
    %v1943 = vpack.c.b16 %v1829, %v1827
    %v1944 = vpack.c.b16 %v1832, %v1830
    %v1945 = vpack.c.b16 %v1833, %v1831
    %v1946 = vpack.c.b16 %v1836, %v1834
    %v1947 = vpack.c.b16 %v1837, %v1835
    %v1948 = vpack.c.b16 %v1840, %v1838
    %v1949 = vpack.c.b16 %v1841, %v1839
    %v1950 = vpack.c.b16 %v1844, %v1842
    %v1951 = vpack.c.b16 %v1845, %v1843
    %v1952 = vpack.c.b16 %v1848, %v1846
    %v1953 = vpack.c.b16 %v1849, %v1847
    %v1954 = vpack.c.b16 %v1852, %v1850
    %v1955 = vpack.c.b16 %v1853, %v1851
    %v1956 = vpack.c.b16 %v1856, %v1854
    %v1957 = vpack.c.b16 %v1857, %v1855
    %v1958 = vpack.c.b16 %v1860, %v1858
    %v1959 = vpack.c.b16 %v1861, %v1859
    %v1960 = vpack.c.b16 %v1864, %v1862
    %v1961 = vpack.c.b16 %v1865, %v1863
    %v1962 = vpack.c.b16 %v1868, %v1866
    %v1963 = vpack.c.b16 %v1869, %v1867
    %v1964 = vpack.c.b16 %v1872, %v1870
    %v1965 = vpack.c.b16 %v1873, %v1871
    %v1966 = vpack.c.b16 %v1876, %v1874
    %v1967 = vpack.c.b16 %v1877, %v1875
    %v1968 = vpack.c.b16 %v1880, %v1878
    %v1969 = vpack.c.b16 %v1881, %v1879
    %v1970 = vpack.c.b16 %v1884, %v1882
    %v1971 = vpack.c.b16 %v1885, %v1883
    %v1972 = vpack.c.b16 %v1888, %v1886
    %v1973 = vpack.c.b16 %v1889, %v1887
    %v1974 = vpack.c.b16 %v1892, %v1890
    %v1975 = vpack.c.b16 %v1893, %v1891
    %v1976 = vpack.c.b16 %v1896, %v1894
    %v1977 = vpack.c.b16 %v1897, %v1895
    %v1978 = vpack.c.b16 %v1900, %v1898
    %v1979 = vpack.c.b16 %v1901, %v1899
    %v1980 = vpack.c.b16 %v1904, %v1902
    %v1981 = vpack.c.b16 %v1905, %v1903
    %v1982 = vpack.c.b16 %v1908, %v1906
    %v1983 = vpack.c.b16 %v1909, %v1907
    %v1984 = vpack.c.b16 %v1912, %v1910
    %v1985 = vpack.c.b16 %v1913, %v1911
    %v1986 = vpack.c.b16 %v1916, %v1914
    %v1987 = vpack.c.b16 %v1917, %v1915
    %v1988 = vpack.c.b16 %v1920, %v1918
    %v1989 = vpack.c.b16 %v1921, %v1919
    %v1990 = vpack.c.b16 %v1924, %v1922
    %v1991 = vpack.c.b16 %v1925, %v1923
    %v1992 = vpack.c.b16 %v1928, %v1926
    %v1993 = vpack.c.b16 %v1929, %v1927
    %2058 = vmatprep.subr.bf16.mxu0 %v1931
    %2059 = vmatpush1.bf16.msra.mxu0 %v1930
    %2060 = vmatprep.subr.bf16.mxu0 %v1933
    %2061 = vmatpush1.bf16.msra.mxu0 %v1932
    %2062 = vmatprep.subr.bf16.mxu0 %v1935
    %2063 = vmatpush1.bf16.msra.mxu0 %v1934
    %2064 = vmatprep.subr.bf16.mxu0 %v1937
    %2065 = vmatpush1.bf16.msra.mxu0 %v1936
    %2066 = vmatprep.subr.bf16.mxu0 %v1939
    %2067 = vmatpush1.bf16.msra.mxu0 %v1938
    %2068 = vmatprep.subr.bf16.mxu0 %v1941
    %2069 = vmatpush1.bf16.msra.mxu0 %v1940
    %2070 = vmatprep.subr.bf16.mxu0 %v1943
    %2071 = vmatpush1.bf16.msra.mxu0 %v1942
    %2072 = vmatprep.subr.bf16.mxu0 %v1945
    %2073 = vmatpush1.bf16.msra.mxu0 %v1944
    %2074 = vmatprep.subr.bf16.mxu0 %v1947
    %2075 = vmatpush1.bf16.msra.mxu0 %v1946
    %2076 = vmatprep.subr.bf16.mxu0 %v1949
    %2077 = vmatpush1.bf16.msra.mxu0 %v1948
    %2078 = vmatprep.subr.bf16.mxu0 %v1951
    %2079 = vmatpush1.bf16.msra.mxu0 %v1950
    %2080 = vmatprep.subr.bf16.mxu0 %v1953
    %2081 = vmatpush1.bf16.msra.mxu0 %v1952
    %2082 = vmatprep.subr.bf16.mxu0 %v1955
    %2083 = vmatpush1.bf16.msra.mxu0 %v1954
    %2084 = vmatprep.subr.bf16.mxu0 %v1957
    %2085 = vmatpush1.bf16.msra.mxu0 %v1956
    %2086 = vmatprep.subr.bf16.mxu0 %v1959
    %2087 = vmatpush1.bf16.msra.mxu0 %v1958
    %2088 = vmatprep.subr.bf16.mxu0 %v1961
    %2089 = vmatpush1.bf16.msra.mxu0 %v1960
    %2090 = vmatprep.mubr.bf16.mxu0 %v1659
    %2091 = vmatmul.mubr.bf16.gmra.mrb[0].mxu0 %v1658
    %v2092 = vpop.f32.mrb[0].mxu0
    %v2093 = vadd.f32 %v1731, %v2092
    %v2094 = vpop.f32.mrb[0].mxu0
    %v2095 = vadd.f32 %v1735, %v2094
    %v2096 = vpop.f32.mrb[0].mxu0
    %v2097 = vadd.f32 %v1731, %v2096
    %v2098 = vpop.f32.mrb[0].mxu0
    %v2099 = vadd.f32 %v1735, %v2098
    %2100 = vdwg.mxu0
    %2101 = vmatprep.subr.bf16.mxu0 %v1963
    %2102 = vmatpush1.bf16.msra.mxu0 %v1962
    %2103 = vmatprep.subr.bf16.mxu0 %v1965
    %2104 = vmatpush1.bf16.msra.mxu0 %v1964
    %2105 = vmatprep.subr.bf16.mxu0 %v1967
    %2106 = vmatpush1.bf16.msra.mxu0 %v1966
    %2107 = vmatprep.subr.bf16.mxu0 %v1969
    %2108 = vmatpush1.bf16.msra.mxu0 %v1968
    %2109 = vmatprep.subr.bf16.mxu0 %v1971
    %2110 = vmatpush1.bf16.msra.mxu0 %v1970
    %2111 = vmatprep.subr.bf16.mxu0 %v1973
    %2112 = vmatpush1.bf16.msra.mxu0 %v1972
    %2113 = vmatprep.subr.bf16.mxu0 %v1975
    %2114 = vmatpush1.bf16.msra.mxu0 %v1974
    %2115 = vmatprep.subr.bf16.mxu0 %v1977
    %2116 = vmatpush1.bf16.msra.mxu0 %v1976
    %2117 = vmatprep.subr.bf16.mxu0 %v1979
    %2118 = vmatpush1.bf16.msra.mxu0 %v1978
    %2119 = vmatprep.subr.bf16.mxu0 %v1981
    %2120 = vmatpush1.bf16.msra.mxu0 %v1980
    %2121 = vmatprep.subr.bf16.mxu0 %v1983
    %2122 = vmatpush1.bf16.msra.mxu0 %v1982
    %2123 = vmatprep.subr.bf16.mxu0 %v1985
    %2124 = vmatpush1.bf16.msra.mxu0 %v1984
    %2125 = vmatprep.subr.bf16.mxu0 %v1987
    %2126 = vmatpush1.bf16.msra.mxu0 %v1986
    %2127 = vmatprep.subr.bf16.mxu0 %v1989
    %2128 = vmatpush1.bf16.msra.mxu0 %v1988
    %2129 = vmatprep.subr.bf16.mxu0 %v1991
    %2130 = vmatpush1.bf16.msra.mxu0 %v1990
    %2131 = vmatprep.subr.bf16.mxu0 %v1993
    %2132 = vmatpush1.bf16.msra.mxu0 %v1992
    %2133 = vmatprep.mubr.bf16.mxu0 %v1661
    %2134 = vmatmul.mubr.bf16.gmra.mrb[0].mxu0 %v1660
    %v2135 = vpop.f32.mrb[0].mxu0
    %v2136 = vadd.f32 %v2093, %v2135
    %v2137 = vpop.f32.mrb[0].mxu0
    %v2138 = vadd.f32 %v2095, %v2137
    %v2139 = vpop.f32.mrb[0].mxu0
    %v2140 = vadd.f32 %v2097, %v2139
    %v2141 = vpop.f32.mrb[0].mxu0
    %v2142 = vadd.f32 %v2099, %v2141
    %2143 = vdwg.mxu0
    %v2144 = vmax.f32 %v2136, 0.0
    %v2145 = vmax.f32 %v2138, 0.0
    %v2146 = vmax.f32 %v2140, 0.0
    %v2147 = vmax.f32 %v2142, 0.0
    %v2148 = vpack.c.bf16 %v2146, %v2144
    %v2149 = vpack.c.bf16 %v2147, %v2145
    %v2150 = vld [vmem:[#allocation9] sm:$0xf]
    %v2151 = vld [vmem:[#allocation9 + $0x4] sm:$0xf]
    %v2152 = vld [vmem:[#allocation9 + $0x8] sm:$0xf]
    %v2153 = vld [vmem:[#allocation9 + $0xc] sm:$0xf]
    %v2154 = vld [vmem:[#allocation9 + $0x10] sm:$0xf]
    %v2155 = vld [vmem:[#allocation9 + $0x14] sm:$0xf]
    %v2156 = vld [vmem:[#allocation9 + $0x18] sm:$0xf]
    %v2157 = vld [vmem:[#allocation9 + $0x1c] sm:$0xf]
    %v2158 = vld [vmem:[#allocation9 + $0x20] sm:$0xf]
    %v2159 = vld [vmem:[#allocation9 + $0x24] sm:$0xf]
    %v2160 = vld [vmem:[#allocation9 + $0x28] sm:$0xf]
    %v2161 = vld [vmem:[#allocation9 + $0x2c] sm:$0xf]
    %v2162 = vld [vmem:[#allocation9 + $0x30] sm:$0xf]
    %v2163 = vld [vmem:[#allocation9 + $0x34] sm:$0xf]
    %v2164 = vld [vmem:[#allocation9 + $0x38] sm:$0xf]
    %v2165 = vld [vmem:[#allocation9 + $0x3c] sm:$0xf]
    %v2166 = vld [vmem:[#allocation9 + $0x40] sm:$0xf]
    %v2167 = vld [vmem:[#allocation9 + $0x44] sm:$0xf]
    %v2168 = vld [vmem:[#allocation9 + $0x48] sm:$0xf]
    %v2169 = vld [vmem:[#allocation9 + $0x4c] sm:$0xf]
    %v2170 = vld [vmem:[#allocation9 + $0x50] sm:$0xf]
    %v2171 = vld [vmem:[#allocation9 + $0x54] sm:$0xf]
    %v2172 = vld [vmem:[#allocation9 + $0x58] sm:$0xf]
    %v2173 = vld [vmem:[#allocation9 + $0x5c] sm:$0xf]
    %v2174 = vld [vmem:[#allocation9 + $0x60] sm:$0xf]
    %v2175 = vld [vmem:[#allocation9 + $0x64] sm:$0xf]
    %v2176 = vld [vmem:[#allocation9 + $0x68] sm:$0xf]
    %v2177 = vld [vmem:[#allocation9 + $0x6c] sm:$0xf]
    %v2178 = vld [vmem:[#allocation9 + $0x70] sm:$0xf]
    %v2179 = vld [vmem:[#allocation9 + $0x74] sm:$0xf]
    %v2180 = vld [vmem:[#allocation9 + $0x78] sm:$0xf]
    %v2181 = vld [vmem:[#allocation9 + $0x7c] sm:$0xf]
    %v2182 = vld [vmem:[%s6] sm:$0x1]
    %v2184 = vlaneseq
    %v2185 = vshrl.u32 %v2184, 7
    %v2186 = vsub.s32 0, %v2185
    %v2187 = vrot.slane %v2182, %v2186
    %v2221 = vunpack.c.l.b16 %v2150
    %v2222 = vunpack.c.l.b16 %v2151
    %v2223 = vunpack.c.l.b16 %v2152
    %v2224 = vunpack.c.l.b16 %v2153
    %v2225 = vunpack.c.l.b16 %v2154
    %v2226 = vunpack.c.l.b16 %v2155
    %v2227 = vunpack.c.l.b16 %v2156
    %v2228 = vunpack.c.l.b16 %v2157
    %v2229 = vunpack.c.l.b16 %v2158
    %v2230 = vunpack.c.l.b16 %v2159
    %v2231 = vunpack.c.l.b16 %v2160
    %v2232 = vunpack.c.l.b16 %v2161
    %v2233 = vunpack.c.l.b16 %v2162
    %v2234 = vunpack.c.l.b16 %v2163
    %v2235 = vunpack.c.l.b16 %v2164
    %v2236 = vunpack.c.l.b16 %v2165
    %v2237 = vunpack.c.l.b16 %v2166
    %v2238 = vunpack.c.l.b16 %v2167
    %v2239 = vunpack.c.l.b16 %v2168
    %v2240 = vunpack.c.l.b16 %v2169
    %v2241 = vunpack.c.l.b16 %v2170
    %v2242 = vunpack.c.l.b16 %v2171
    %v2243 = vunpack.c.l.b16 %v2172
    %v2244 = vunpack.c.l.b16 %v2173
    %v2245 = vunpack.c.l.b16 %v2174
    %v2246 = vunpack.c.l.b16 %v2175
    %v2247 = vunpack.c.l.b16 %v2176
    %v2248 = vunpack.c.l.b16 %v2177
    %v2249 = vunpack.c.l.b16 %v2178
    %v2250 = vunpack.c.l.b16 %v2179
    %v2251 = vunpack.c.l.b16 %v2180
    %v2252 = vunpack.c.l.b16 %v2181
    %v2253 = vpack.c.b16 %v2222, %v2221
    %v2254 = vpack.c.b16 %v2224, %v2223
    %v2255 = vpack.c.b16 %v2226, %v2225
    %v2256 = vpack.c.b16 %v2228, %v2227
    %v2257 = vpack.c.b16 %v2230, %v2229
    %v2258 = vpack.c.b16 %v2232, %v2231
    %v2259 = vpack.c.b16 %v2234, %v2233
    %v2260 = vpack.c.b16 %v2236, %v2235
    %v2261 = vpack.c.b16 %v2238, %v2237
    %v2262 = vpack.c.b16 %v2240, %v2239
    %v2263 = vpack.c.b16 %v2242, %v2241
    %v2264 = vpack.c.b16 %v2244, %v2243
    %v2265 = vpack.c.b16 %v2246, %v2245
    %v2266 = vpack.c.b16 %v2248, %v2247
    %v2267 = vpack.c.b16 %v2250, %v2249
    %v2268 = vpack.c.b16 %v2252, %v2251
    %2285 = vmatprep.subr.bf16.mxu0 0
    %2286 = vmatpush1.bf16.msra.mxu0 %v2253
    %2287 = vmatprep.subr.bf16.mxu0 0
    %2288 = vmatpush1.bf16.msra.mxu0 %v2254
    %2289 = vmatprep.subr.bf16.mxu0 0
    %2290 = vmatpush1.bf16.msra.mxu0 %v2255
    %2291 = vmatprep.subr.bf16.mxu0 0
    %2292 = vmatpush1.bf16.msra.mxu0 %v2256
    %2293 = vmatprep.subr.bf16.mxu0 0
    %2294 = vmatpush1.bf16.msra.mxu0 %v2257
    %2295 = vmatprep.subr.bf16.mxu0 0
    %2296 = vmatpush1.bf16.msra.mxu0 %v2258
    %2297 = vmatprep.subr.bf16.mxu0 0
    %2298 = vmatpush1.bf16.msra.mxu0 %v2259
    %2299 = vmatprep.subr.bf16.mxu0 0
    %2300 = vmatpush1.bf16.msra.mxu0 %v2260
    %2301 = vmatprep.subr.bf16.mxu0 0
    %2302 = vmatpush1.bf16.msra.mxu0 %v2261
    %2303 = vmatprep.subr.bf16.mxu0 0
    %2304 = vmatpush1.bf16.msra.mxu0 %v2262
    %2305 = vmatprep.subr.bf16.mxu0 0
    %2306 = vmatpush1.bf16.msra.mxu0 %v2263
    %2307 = vmatprep.subr.bf16.mxu0 0
    %2308 = vmatpush1.bf16.msra.mxu0 %v2264
    %2309 = vmatprep.subr.bf16.mxu0 0
    %2310 = vmatpush1.bf16.msra.mxu0 %v2265
    %2311 = vmatprep.subr.bf16.mxu0 0
    %2312 = vmatpush1.bf16.msra.mxu0 %v2266
    %2313 = vmatprep.subr.bf16.mxu0 0
    %2314 = vmatpush1.bf16.msra.mxu0 %v2267
    %2315 = vmatprep.subr.bf16.mxu0 0
    %2316 = vmatpush1.bf16.msra.mxu0 %v2268
    %2317 = vmatprep.mubr.bf16.mxu0 %v2149
    %2318 = vmatmul.mubr.bf16.gmra.mrb[0].mxu0 %v2148
    %v2319 = vpop.f32.mrb[0].mxu0
    %v2320 = vadd.f32 %v2187, %v2319
    %v2321 = vpop.f32.mrb[0].mxu0
    %v2322 = vpop.f32.mrb[0].mxu0
    %v2323 = vadd.f32 %v2187, %v2322
    %v2324 = vpop.f32.mrb[0].mxu0
    %2325 = vdwg.mxu0
    %v2326 = vmax.f32 %v2320, 0.0
    %v2327 = vmax.f32 %v2323, 0.0
    %v2328 = vld [vmem:[%s7] sm:$0xf]
    %v2329 = vpack.c.bf16 %v2327, %v2326
    %2330 = vmatprep.subr.bf16.mxu0 0
    %2331 = vmatpush1.bf16.xpose.msra.mxu0 %v2329
    %2332 = vmatprep.subr.bf16.mxu0 0
    %2333 = vmatpush1.bf16.xpose.msra.mxu0 0
    %2334 = vmatprep.subr.bf16.mxu0 0
    %2335 = vmatpush1.bf16.xpose.msra.mxu0 0
    %2336 = vmatprep.subr.bf16.mxu0 0
    %2337 = vmatpush1.bf16.xpose.msra.mxu0 0
    %2338 = vmatprep.subr.bf16.mxu0 0
    %2339 = vmatpush1.bf16.xpose.msra.mxu0 0
    %2340 = vmatprep.subr.bf16.mxu0 0
    %2341 = vmatpush1.bf16.xpose.msra.mxu0 0
    %2342 = vmatprep.subr.bf16.mxu0 0
    %2343 = vmatpush1.bf16.xpose.msra.mxu0 0
    %2344 = vmatprep.subr.bf16.mxu0 0
    %2345 = vmatpush1.bf16.xpose.msra.mxu0 0
    %2346 = vmatprep.subr.bf16.mxu0 0
    %2347 = vmatpush1.bf16.xpose.msra.mxu0 0
    %2348 = vmatprep.subr.bf16.mxu0 0
    %2349 = vmatpush1.bf16.xpose.msra.mxu0 0
    %2350 = vmatprep.subr.bf16.mxu0 0
    %2351 = vmatpush1.bf16.xpose.msra.mxu0 0
    %2352 = vmatprep.subr.bf16.mxu0 0
    %2353 = vmatpush1.bf16.xpose.msra.mxu0 0
    %2354 = vmatprep.subr.bf16.mxu0 0
    %2355 = vmatpush1.bf16.xpose.msra.mxu0 0
    %2356 = vmatprep.subr.bf16.mxu0 0
    %2357 = vmatpush1.bf16.xpose.msra.mxu0 0
    %2358 = vmatprep.subr.bf16.mxu0 0
    %2359 = vmatpush1.bf16.xpose.msra.mxu0 0
    %2360 = vmatprep.subr.bf16.mxu0 0
    %2361 = vmatpush1.bf16.xpose.msra.mxu0 0
    %2362 = vmatprep.mubr.bf16.mxu0 0
    %2363 = vmatmul.mubr.bf16.gmra.mrb[0].mxu0 %v2328
    %v2364 = vpop.f32.mrb[0].mxu0
    %v2365 = vadd.f32 0.0, %v2364
    %v2366 = vpop.f32.mrb[0].mxu0
    %v2367 = vpop.f32.mrb[0].mxu0
    %v2368 = vpop.f32.mrb[0].mxu0
    %2369 = vdwg.mxu0
    %v2370 = vld [vmem:[#allocation2] sm:$0x1]
    %2372 = vset.pattern.permute.xlu0 0
    %2373 = vperm.xlu0 %2372, %v2370
    %v2374 = vpop.permute.xlu0 %2373
    %v2376 = vlaneseq
    %v2377 = vshrl.u32 %v2376, 7
    %v2378 = vsub.s32 0, %v2377
    %v2379 = vrot.slane %v2374, %v2378
    %v2380 = vadd.f32 %v2365, %v2379
    %v2381 = vsub.f32 0.0, %v2380
    %v2382 = vmul.f32 %v2381, 1.442695
    %v2383 = vpow.pop %v2382
    %v2384 = vadd.f32 %v2383, 1.0
    %v2385 = vrcp.pop %v2384
    %v2386 = vmul.f32 1.0, %v2385
    %vm2387 = vcmask 122880
    %2388 = vst.msk [vmem:[#allocation11] sm:$0x1] %vm2387, %v2386
    // Predicated region
    $region54: #{tpu_custom_call.1} parent=1 // pred_check
      _
    $region55: #{tpu_custom_call.1} parent=1 // pred_check_branch
      %2390 = sbr.rel (0) target = $region57
    $region56: #{tpu_custom_call.1} parent=1 // pred_region
      %s2392 = ssub.s32 16, 16
      %2393 = vsyncadd [#allocation5], %s2392
      %s2395 = sshll.u32 [#allocation11], 4
      %s2396 = int_to_ptr.vmem [resolvable:$true] %s2395
      %2398 = dma.vmem_to_hbm [thread:$0]  %s2396, 16, %s9, [#allocation5]
    $region57: #{tpu_custom_call.1} parent=1 // pred_fallthru
      _
    // Predicated region
    $region58: #{tpu_custom_call.1} parent=1 // pred_check
      _
    $region59: #{tpu_custom_call.1} parent=1 // pred_check_branch
      %2400 = sbr.rel (0) target = $region61
    $region60: #{tpu_custom_call.1} parent=1 // pred_region
      %2401 = dma.done [#allocation5], 16
    $region61: #{tpu_custom_call.1} parent=1 // pred_fallthru
      _
    %2402 = vsyncpa [#allocation4], 1
    %2403 = vsyncpa [#allocation7], 1
    %2404 = vsyncpa [#allocation10], 1
    %2405 = vsyncpa [#allocation5], 1

</llo_original>
